<compile_context>
chip_gen: v5e
topology: v5e:2x2
jax: 0.10.0
libtpu: 0.0.40
codegen_flags: <defaults>
</compile_context>

<pallas_src>
import functools

import jax
import jax.numpy as jnp
from jax import lax
from jax.experimental import pallas as pl
from jax.experimental.pallas import tpu as pltpu

INPUT_SIZE = 100
HIDDEN = 16      # H ; 8H = 128 -> one full vreg of fused gates per step
BATCH = 2
SEQ = 8


# ----------------------------------------------------------------------------
# Pallas kernel: full forward pass (2 fused bidirectional layers + head)
# ----------------------------------------------------------------------------
def _disc_lstm_kernel(x_ref, w1_ih_ref, p_ref, out_ref, o1_ref, o2_ref, *, T, B, H):
    H2 = 2 * H           # 32
    G = 8 * H            # 128 gate lanes: [i_f,i_b | f_f,f_b | o_f,o_b | g_f,g_b]

    # ---- unpack packed parameter block (static row slices, loaded once) ----
    w1_bd = p_ref[0:H2, :]                     # (2H, 8H) block-diag hidden weights, layer 1
    w2_ih = p_ref[H2:2 * H2, :]                # (2H, 8H) input weights, layer 2
    w2_bd = p_ref[2 * H2:3 * H2, :]            # (2H, 8H) block-diag hidden weights, layer 2
    b1 = p_ref[3 * H2:3 * H2 + 1, :]           # (1, 8H) summed biases, layer 1
    b2 = p_ref[3 * H2 + 1:3 * H2 + 2, :]       # (1, 8H) summed biases, layer 2
    head = p_ref[3 * H2 + 2:3 * H2 + 3, :]     # (1, 8H): [:2H]=linear W, [2H]=linear bias
    wl = head[:, 0:H2]                         # (1, 2H)
    bl = head[:, H2:H2 + 1]                    # (1, 1)

    # Forward-direction gate columns: 16-lane sub-blocks alternate fwd / bwd.
    col = lax.broadcasted_iota(jnp.int32, (B, G), 1)
    fwd_mask = (col % (2 * H)) < H             # (B, 8H) bool

    def run_layer(x_flat, w_ih, bias, w_bd, out_scr):
        # Hoisted input projection (+ biases): one lane-dense 128-wide matmul.
        proj = jnp.dot(x_flat, w_ih, preferred_element_type=jnp.float32) + bias  # (T*B, 8H)

        # Per-step fused projection rows: forward columns use time s, backward
        # columns use time T-1-s.  Independent of the recurrence -> off the
        # critical dependency chain.
        p_step = []
        for s in range(T):
            tb = T - 1 - s
            p_step.append(jnp.where(fwd_mask,
                                    proj[s * B:(s + 1) * B, :],
                                    proj[tb * B:(tb + 1) * B, :]))

        hc = jnp.zeros((B, H2), jnp.float32)   # [h_fwd | h_bwd]
        cc = jnp.zeros((B, H2), jnp.float32)   # [c_fwd | c_bwd]
        for s in range(T):                     # fully unrolled (T static)
            tb = T - 1 - s
            gates = jnp.dot(hc, w_bd, preferred_element_type=jnp.float32) + p_step[s]  # (B, 8H)
            sg = jax.nn.sigmoid(gates[:, 0:3 * H2])   # i|f|o (both dirs): one 96-lane slice
            gg = jnp.tanh(gates[:, 3 * H2:4 * H2])    # g     (both dirs): one 32-lane slice
            i_c = sg[:, 0:H2]
            f_c = sg[:, H2:2 * H2]
            o_c = sg[:, 2 * H2:3 * H2]
            cc = f_c * cc + i_c * gg
            hc = o_c * jnp.tanh(cc)
            out_scr[s * B:(s + 1) * B, 0:H] = hc[:, 0:H]        # fwd h -> time s
            out_scr[tb * B:(tb + 1) * B, H:H2] = hc[:, H:H2]    # bwd h -> time T-1-s

    # ---- layer 1 (bidirectional, fused) ----
    run_layer(x_ref[...], w1_ih_ref[...], b1, w1_bd, o1_ref)
    # ---- ReLU + layer 2 (bidirectional, fused) ----
    x2 = jnp.maximum(o1_ref[...], 0.0)                          # (T*B, 2H)
    run_layer(x2, w2_ih, b2, w2_bd, o2_ref)
    # ---- ReLU + Linear(2H -> 1) + Sigmoid: VPU multiply + lane reduce ----
    h2 = jnp.maximum(o2_ref[...], 0.0)                          # (T*B, 2H)
    logits = jnp.sum(h2 * wl, axis=-1, keepdims=True) + bl      # (T*B, 1)
    out_ref[...] = jax.nn.sigmoid(logits)


# ----------------------------------------------------------------------------
# Wrapper
# ----------------------------------------------------------------------------
def discriminator_lstm_forward(x, packed_params):
    """x: (B, T, D) float32 -> (B, T, 1) float32 (nn.LSTM batch_first semantics)."""
    w1_ih, pblock = packed_params
    B, T, D = x.shape
    x_tm = jnp.transpose(x, (1, 0, 2)).reshape(T * B, D)   # row t*B + b

    kernel = functools.partial(_disc_lstm_kernel, T=T, B=B, H=HIDDEN)
    out = pl.pallas_call(
        kernel,
        out_shape=jax.ShapeDtypeStruct((T * B, 1), jnp.float32),
        in_specs=[pl.BlockSpec(memory_space=pltpu.MemorySpace.VMEM)] * 3,
        out_specs=pl.BlockSpec(memory_space=pltpu.MemorySpace.VMEM),
        scratch_shapes=[pltpu.VMEM((T * B, 2 * HIDDEN), jnp.float32),
                        pltpu.VMEM((T * B, 2 * HIDDEN), jnp.float32)],
    )(x_tm, w1_ih, pblock)
    return jnp.transpose(out.reshape(T, B), (1, 0))[..., None]


# ----------------------------------------------------------------------------
# Deterministic raw parameter init (PyTorch layout: w_ih (4H,in), w_hh (4H,H),
# b_ih (4H,), b_hh (4H,), gate row order i,f,g,o) and kernel packing
# ----------------------------------------------------------------------------
def init_raw_params(key, input_size=INPUT_SIZE, hidden=HIDDEN):
    def u(kk, shape, bound):
        return jax.random.uniform(kk, shape, jnp.float32, -bound, bound)

    keys = iter(jax.random.split(key, 20))
    kb = 1.0 / float(hidden) ** 0.5

    def lstm_dir(in_size):
        return (u(next(keys), (4 * hidden, in_size), kb),
                u(next(keys), (4 * hidden, hidden), kb),
                u(next(keys), (4 * hidden,), kb),
                u(next(keys), (4 * hidden,), kb))

    l1f = lstm_dir(input_size)
    l1b = lstm_dir(input_size)
    l2f = lstm_dir(2 * hidden)
    l2b = lstm_dir(2 * hidden)
    kl = 1.0 / float(2 * hidden) ** 0.5
    wl = u(next(keys), (1, 2 * hidden), kl)
    bl = u(next(keys), (1,), kl)
    return (l1f, l1b, l2f, l2b, (wl, bl))


def pack_params(raw, input_size=INPUT_SIZE, hidden=HIDDEN):
    """Pack 14 PyTorch-layout arrays into (W1_ih (D,8H), block (99,128))."""
    l1f, l1b, l2f, l2b, (wl, bl) = raw
    H = hidden

    def cols(k, d):  # gate slot k in our order (i, f, o, g), direction d
        start = k * 2 * H + d * H
        return start, start + H

    def pack_layer(dir_params, in_size):
        w_ih = jnp.zeros((in_size, 8 * H), jnp.float32)
        w_bd = jnp.zeros((2 * H, 8 * H), jnp.float32)
        bias = jnp.zeros((1, 8 * H), jnp.float32)
        for d, (wi, wh, bi, bh) in enumerate(dir_params):
            wi_t, wh_t, bsum = wi.T, wh.T, bi + bh
            for k, src in enumerate((0, 1, 3, 2)):   # ours (i,f,o,g) <- PyTorch (i,f,g,o)
                c0, c1 = cols(k, d)
                s0, s1 = src * H, (src + 1) * H
                w_ih = w_ih.at[:, c0:c1].set(wi_t[:, s0:s1])
                w_bd = w_bd.at[d * H:(d + 1) * H, c0:c1].set(wh_t[:, s0:s1])
                bias = bias.at[0, c0:c1].set(bsum[s0:s1])
        return w_ih, w_bd, bias

    w1_ih, w1_bd, b1 = pack_layer((l1f, l1b), input_size)
    _w2_ih, w2_bd, b2 = pack_layer((l2f, l2b), 2 * H)
    head = jnp.zeros((1, 8 * H), jnp.float32)
    head = head.at[0, :2 * H].set(wl[0])
    head = head.at[0, 2 * H].set(bl[0])
    pblock = jnp.concatenate([w1_bd, _w2_ih, w2_bd, b1, b2, head], axis=0)  # (99, 128)
    return w1_ih, pblock


# ----------------------------------------------------------------------------
# Pure-JAX reference (PyTorch semantics) for verification
# ----------------------------------------------------------------------------
def _ref_lstm_dir(x, wi, wh, bi, bh, reverse):
    B, T, _ = x.shape
    H = wh.shape[1]
    h = jnp.zeros((B, H), jnp.float32)
    c = jnp.zeros((B, H), jnp.float32)
    outs = [None] * T
    ts = range(T - 1, -1, -1) if reverse else range(T)
    for t in ts:
        g = x[:, t] @ wi.T + h @ wh.T + bi + bh
        i_g = jax.nn.sigmoid(g[:, :H])
        f_g = jax.nn.sigmoid(g[:, H:2 * H])
        g_g = jnp.tanh(g[:, 2 * H:3 * H])
        o_g = jax.nn.sigmoid(g[:, 3 * H:4 * H])
        c = f_g * c + i_g * g_g
        h = o_g * jnp.tanh(c)
        outs[t] = h
    return jnp.stack(outs, axis=1)  # (B, T, H)


def reference_forward(x, raw):
    l1f, l1b, l2f, l2b, (wl, bl) = raw
    o1 = jnp.concatenate([_ref_lstm_dir(x, *l1f, False),
                          _ref_lstm_dir(x, *l1b, True)], axis=-1)
    o1 = jnp.maximum(o1, 0.0)
    o2 = jnp.concatenate([_ref_lstm_dir(o1, *l2f, False),
                          _ref_lstm_dir(o1, *l2b, True)], axis=-1)
    o2 = jnp.maximum(o2, 0.0)
    return jax.nn.sigmoid(o2 @ wl.T + bl)


if __name__ == "__main__":
    key = jax.random.PRNGKey(0)
    kx, kp = jax.random.split(key)
    x = jax.random.normal(kx, (BATCH, SEQ, INPUT_SIZE), jnp.float32)
    raw = init_raw_params(kp)
    packed = pack_params(raw)

    out = discriminator_lstm_forward(x, packed)
    out = jax.block_until_ready(out)

    ref = reference_forward(x, raw)
    assert out.shape == (BATCH, SEQ, 1), out.shape
    assert jnp.allclose(out, ref, atol=2e-5, rtol=1e-5), (
        float(jnp.max(jnp.abs(out - ref))))
    print("KERNEL_OK")
</pallas_src>

<mosaic_0001>
module attributes {stable_mosaic.version = 11 : i64} {
  func.func @_disc_lstm_kernel(%arg0: memref<16x100xf32, #tpu.memory_space<vmem>>, %arg1: memref<100x128xf32, #tpu.memory_space<vmem>>, %arg2: memref<99x128xf32, #tpu.memory_space<vmem>>, %arg3: memref<16x1xf32, #tpu.memory_space<vmem>>, %arg4: memref<16x32xf32, #tpu.memory_space<vmem>>, %arg5: memref<16x32xf32, #tpu.memory_space<vmem>>) attributes {dimension_semantics = [], scalar_prefetch = 0 : i64, scratch_operands = 2 : i64, tpu.core_type = #tpu.core_type<tc>} {
    %c0 = arith.constant 0 : index
    %c0_0 = arith.constant 0 : index
    %0 = vector.load %arg2[%c0, %c0_0] : memref<99x128xf32, #tpu.memory_space<vmem>>, vector<32x128xf32>
    %c32 = arith.constant 32 : index
    %c0_1 = arith.constant 0 : index
    %1 = vector.load %arg2[%c32, %c0_1] : memref<99x128xf32, #tpu.memory_space<vmem>>, vector<32x128xf32>
    %c64 = arith.constant 64 : index
    %c0_2 = arith.constant 0 : index
    %2 = vector.load %arg2[%c64, %c0_2] : memref<99x128xf32, #tpu.memory_space<vmem>>, vector<32x128xf32>
    %c96 = arith.constant 96 : index
    %c0_3 = arith.constant 0 : index
    %3 = vector.load %arg2[%c96, %c0_3] : memref<99x128xf32, #tpu.memory_space<vmem>>, vector<1x128xf32>
    %c97 = arith.constant 97 : index
    %c0_4 = arith.constant 0 : index
    %4 = vector.load %arg2[%c97, %c0_4] : memref<99x128xf32, #tpu.memory_space<vmem>>, vector<1x128xf32>
    %c98 = arith.constant 98 : index
    %c0_5 = arith.constant 0 : index
    %5 = vector.load %arg2[%c98, %c0_5] : memref<99x128xf32, #tpu.memory_space<vmem>>, vector<1x128xf32>
    %6 = vector.extract_strided_slice %5 {offsets = [0, 0], sizes = [1, 32], strides = [1, 1]} : vector<1x128xf32> to vector<1x32xf32>
    %7 = vector.extract_strided_slice %5 {offsets = [0, 32], sizes = [1, 1], strides = [1, 1]} : vector<1x128xf32> to vector<1x1xf32>
    %8 = tpu.iota {dimensions = array<i32: 1>} : vector<2x128xi32>
    %c32_i32 = arith.constant 32 : i32
    %c0_i32 = arith.constant 0 : i32
    %9 = arith.cmpi eq, %c32_i32, %c0_i32 : i32
    %c1_i32 = arith.constant 1 : i32
    %10 = arith.select %9, %c1_i32, %c32_i32 : i32
    %11 = vector.broadcast %10 : i32 to vector<2x128xi32>
    %12 = arith.remsi %8, %11 : vector<2x128xi32>
    %c0_i32_6 = arith.constant 0 : i32
    %13 = vector.broadcast %c0_i32_6 : i32 to vector<2x128xi32>
    %14 = arith.cmpi ne, %12, %13 : vector<2x128xi32>
    %c0_i32_7 = arith.constant 0 : i32
    %15 = vector.broadcast %c0_i32_7 : i32 to vector<2x128xi32>
    %16 = arith.cmpi slt, %12, %15 : vector<2x128xi32>
    %c0_i32_8 = arith.constant 0 : i32
    %17 = arith.cmpi slt, %10, %c0_i32_8 : i32
    %18 = vector.broadcast %17 : i1 to vector<2x128xi1>
    %19 = vector.broadcast %18 : vector<2x128xi1> to vector<2x128xi1>
    %20 = arith.xori %16, %19 : vector<2x128xi1>
    %21 = arith.andi %20, %14 : vector<2x128xi1>
    %22 = vector.broadcast %10 : i32 to vector<2x128xi32>
    %23 = arith.addi %12, %22 : vector<2x128xi32>
    %24 = arith.select %21, %23, %12 : vector<2x128xi1>, vector<2x128xi32>
    %c16_i32 = arith.constant 16 : i32
    %25 = vector.broadcast %c16_i32 : i32 to vector<2x128xi32>
    %26 = arith.cmpi slt, %24, %25 : vector<2x128xi32>
    %c0_9 = arith.constant 0 : index
    %c0_10 = arith.constant 0 : index
    %27 = vector.load %arg0[%c0_9, %c0_10] : memref<16x100xf32, #tpu.memory_space<vmem>>, vector<16x100xf32>
    %c0_11 = arith.constant 0 : index
    %c0_12 = arith.constant 0 : index
    %28 = vector.load %arg1[%c0_11, %c0_12] : memref<100x128xf32, #tpu.memory_space<vmem>>, vector<100x128xf32>
    %cst = arith.constant dense<0.000000e+00> : vector<16x128xf32>
    %29 = tpu.matmul %27, %28, %cst {dimension_numbers = #tpu.dot_dimension_numbers<[1], [0], [0], [1], [0, 0, 1, 1], [], []>} : vector<16x100xf32>, vector<100x128xf32>, vector<16x128xf32> -> vector<16x128xf32>
    %30 = vector.broadcast %3 : vector<1x128xf32> to vector<16x128xf32>
    %31 = arith.addf %29, %30 : vector<16x128xf32>
    %32 = vector.extract_strided_slice %31 {offsets = [0, 0], sizes = [2, 128], strides = [1, 1]} : vector<16x128xf32> to vector<2x128xf32>
    %33 = vector.extract_strided_slice %31 {offsets = [14, 0], sizes = [2, 128], strides = [1, 1]} : vector<16x128xf32> to vector<2x128xf32>
    %34 = arith.select %26, %32, %33 : vector<2x128xi1>, vector<2x128xf32>
    %35 = vector.extract_strided_slice %31 {offsets = [2, 0], sizes = [2, 128], strides = [1, 1]} : vector<16x128xf32> to vector<2x128xf32>
    %36 = vector.extract_strided_slice %31 {offsets = [12, 0], sizes = [2, 128], strides = [1, 1]} : vector<16x128xf32> to vector<2x128xf32>
    %37 = arith.select %26, %35, %36 : vector<2x128xi1>, vector<2x128xf32>
    %38 = vector.extract_strided_slice %31 {offsets = [4, 0], sizes = [2, 128], strides = [1, 1]} : vector<16x128xf32> to vector<2x128xf32>
    %39 = vector.extract_strided_slice %31 {offsets = [10, 0], sizes = [2, 128], strides = [1, 1]} : vector<16x128xf32> to vector<2x128xf32>
    %40 = arith.select %26, %38, %39 : vector<2x128xi1>, vector<2x128xf32>
    %41 = vector.extract_strided_slice %31 {offsets = [6, 0], sizes = [2, 128], strides = [1, 1]} : vector<16x128xf32> to vector<2x128xf32>
    %42 = vector.extract_strided_slice %31 {offsets = [8, 0], sizes = [2, 128], strides = [1, 1]} : vector<16x128xf32> to vector<2x128xf32>
    %43 = arith.select %26, %41, %42 : vector<2x128xi1>, vector<2x128xf32>
    %44 = vector.extract_strided_slice %31 {offsets = [8, 0], sizes = [2, 128], strides = [1, 1]} : vector<16x128xf32> to vector<2x128xf32>
    %45 = vector.extract_strided_slice %31 {offsets = [6, 0], sizes = [2, 128], strides = [1, 1]} : vector<16x128xf32> to vector<2x128xf32>
    %46 = arith.select %26, %44, %45 : vector<2x128xi1>, vector<2x128xf32>
    %47 = vector.extract_strided_slice %31 {offsets = [10, 0], sizes = [2, 128], strides = [1, 1]} : vector<16x128xf32> to vector<2x128xf32>
    %48 = vector.extract_strided_slice %31 {offsets = [4, 0], sizes = [2, 128], strides = [1, 1]} : vector<16x128xf32> to vector<2x128xf32>
    %49 = arith.select %26, %47, %48 : vector<2x128xi1>, vector<2x128xf32>
    %50 = vector.extract_strided_slice %31 {offsets = [12, 0], sizes = [2, 128], strides = [1, 1]} : vector<16x128xf32> to vector<2x128xf32>
    %51 = vector.extract_strided_slice %31 {offsets = [2, 0], sizes = [2, 128], strides = [1, 1]} : vector<16x128xf32> to vector<2x128xf32>
    %52 = arith.select %26, %50, %51 : vector<2x128xi1>, vector<2x128xf32>
    %53 = vector.extract_strided_slice %31 {offsets = [14, 0], sizes = [2, 128], strides = [1, 1]} : vector<16x128xf32> to vector<2x128xf32>
    %54 = vector.extract_strided_slice %31 {offsets = [0, 0], sizes = [2, 128], strides = [1, 1]} : vector<16x128xf32> to vector<2x128xf32>
    %55 = arith.select %26, %53, %54 : vector<2x128xi1>, vector<2x128xf32>
    %cst_13 = arith.constant 0.000000e+00 : f32
    %56 = vector.broadcast %cst_13 : f32 to vector<2x32xf32>
    %cst_14 = arith.constant 0.000000e+00 : f32
    %57 = vector.broadcast %cst_14 : f32 to vector<2x32xf32>
    %cst_15 = arith.constant dense<0.000000e+00> : vector<2x128xf32>
    %58 = tpu.matmul %56, %0, %cst_15 {dimension_numbers = #tpu.dot_dimension_numbers<[1], [0], [0], [1], [0, 0, 1, 1], [], []>} : vector<2x32xf32>, vector<32x128xf32>, vector<2x128xf32> -> vector<2x128xf32>
    %59 = arith.addf %58, %34 : vector<2x128xf32>
    %60 = vector.extract_strided_slice %59 {offsets = [0, 0], sizes = [2, 96], strides = [1, 1]} : vector<2x128xf32> to vector<2x96xf32>
    %61 = arith.negf %60 : vector<2x96xf32>
    %62 = math.exp %61 : vector<2x96xf32>
    %cst_16 = arith.constant 1.000000e+00 : f32
    %63 = vector.broadcast %cst_16 : f32 to vector<2x96xf32>
    %64 = arith.addf %63, %62 : vector<2x96xf32>
    %65 = arith.divf %63, %64 : vector<2x96xf32>
    %66 = vector.extract_strided_slice %59 {offsets = [0, 96], sizes = [2, 32], strides = [1, 1]} : vector<2x128xf32> to vector<2x32xf32>
    %67 = math.tanh %66 : vector<2x32xf32>
    %68 = vector.extract_strided_slice %65 {offsets = [0, 0], sizes = [2, 32], strides = [1, 1]} : vector<2x96xf32> to vector<2x32xf32>
    %69 = vector.extract_strided_slice %65 {offsets = [0, 32], sizes = [2, 32], strides = [1, 1]} : vector<2x96xf32> to vector<2x32xf32>
    %70 = vector.extract_strided_slice %65 {offsets = [0, 64], sizes = [2, 32], strides = [1, 1]} : vector<2x96xf32> to vector<2x32xf32>
    %71 = arith.mulf %69, %57 : vector<2x32xf32>
    %72 = arith.mulf %68, %67 : vector<2x32xf32>
    %73 = arith.addf %71, %72 : vector<2x32xf32>
    %74 = math.tanh %73 : vector<2x32xf32>
    %75 = arith.mulf %70, %74 : vector<2x32xf32>
    %76 = vector.extract_strided_slice %75 {offsets = [0, 0], sizes = [2, 16], strides = [1, 1]} : vector<2x32xf32> to vector<2x16xf32>
    %c0_17 = arith.constant 0 : index
    %c0_18 = arith.constant 0 : index
    %77 = vector.load %arg4[%c0_17, %c0_18] : memref<16x32xf32, #tpu.memory_space<vmem>>, vector<2x16xf32>
    tpu.vector_store %arg4[%c0_17, %c0_18], %76 {strides = array<i32>} : memref<16x32xf32, #tpu.memory_space<vmem>>, vector<2x16xf32>,
    %78 = vector.extract_strided_slice %75 {offsets = [0, 16], sizes = [2, 16], strides = [1, 1]} : vector<2x32xf32> to vector<2x16xf32>
    %c14 = arith.constant 14 : index
    %c16 = arith.constant 16 : index
    %79 = vector.load %arg4[%c14, %c16] : memref<16x32xf32, #tpu.memory_space<vmem>>, vector<2x16xf32>
    tpu.vector_store %arg4[%c14, %c16], %78 {strides = array<i32>} : memref<16x32xf32, #tpu.memory_space<vmem>>, vector<2x16xf32>,
    %cst_19 = arith.constant dense<0.000000e+00> : vector<2x128xf32>
    %80 = tpu.matmul %75, %0, %cst_19 {dimension_numbers = #tpu.dot_dimension_numbers<[1], [0], [0], [1], [0, 0, 1, 1], [], []>} : vector<2x32xf32>, vector<32x128xf32>, vector<2x128xf32> -> vector<2x128xf32>
    %81 = arith.addf %80, %37 : vector<2x128xf32>
    %82 = vector.extract_strided_slice %81 {offsets = [0, 0], sizes = [2, 96], strides = [1, 1]} : vector<2x128xf32> to vector<2x96xf32>
    %83 = arith.negf %82 : vector<2x96xf32>
    %84 = math.exp %83 : vector<2x96xf32>
    %cst_20 = arith.constant 1.000000e+00 : f32
    %85 = vector.broadcast %cst_20 : f32 to vector<2x96xf32>
    %86 = arith.addf %85, %84 : vector<2x96xf32>
    %87 = arith.divf %85, %86 : vector<2x96xf32>
    %88 = vector.extract_strided_slice %81 {offsets = [0, 96], sizes = [2, 32], strides = [1, 1]} : vector<2x128xf32> to vector<2x32xf32>
    %89 = math.tanh %88 : vector<2x32xf32>
    %90 = vector.extract_strided_slice %87 {offsets = [0, 0], sizes = [2, 32], strides = [1, 1]} : vector<2x96xf32> to vector<2x32xf32>
    %91 = vector.extract_strided_slice %87 {offsets = [0, 32], sizes = [2, 32], strides = [1, 1]} : vector<2x96xf32> to vector<2x32xf32>
    %92 = vector.extract_strided_slice %87 {offsets = [0, 64], sizes = [2, 32], strides = [1, 1]} : vector<2x96xf32> to vector<2x32xf32>
    %93 = arith.mulf %91, %73 : vector<2x32xf32>
    %94 = arith.mulf %90, %89 : vector<2x32xf32>
    %95 = arith.addf %93, %94 : vector<2x32xf32>
    %96 = math.tanh %95 : vector<2x32xf32>
    %97 = arith.mulf %92, %96 : vector<2x32xf32>
    %98 = vector.extract_strided_slice %97 {offsets = [0, 0], sizes = [2, 16], strides = [1, 1]} : vector<2x32xf32> to vector<2x16xf32>
    %c2 = arith.constant 2 : index
    %c0_21 = arith.constant 0 : index
    %99 = vector.load %arg4[%c2, %c0_21] : memref<16x32xf32, #tpu.memory_space<vmem>>, vector<2x16xf32>
    tpu.vector_store %arg4[%c2, %c0_21], %98 {strides = array<i32>} : memref<16x32xf32, #tpu.memory_space<vmem>>, vector<2x16xf32>,
    %100 = vector.extract_strided_slice %97 {offsets = [0, 16], sizes = [2, 16], strides = [1, 1]} : vector<2x32xf32> to vector<2x16xf32>
    %c12 = arith.constant 12 : index
    %c16_22 = arith.constant 16 : index
    %101 = vector.load %arg4[%c12, %c16_22] : memref<16x32xf32, #tpu.memory_space<vmem>>, vector<2x16xf32>
    tpu.vector_store %arg4[%c12, %c16_22], %100 {strides = array<i32>} : memref<16x32xf32, #tpu.memory_space<vmem>>, vector<2x16xf32>,
    %cst_23 = arith.constant dense<0.000000e+00> : vector<2x128xf32>
    %102 = tpu.matmul %97, %0, %cst_23 {dimension_numbers = #tpu.dot_dimension_numbers<[1], [0], [0], [1], [0, 0, 1, 1], [], []>} : vector<2x32xf32>, vector<32x128xf32>, vector<2x128xf32> -> vector<2x128xf32>
    %103 = arith.addf %102, %40 : vector<2x128xf32>
    %104 = vector.extract_strided_slice %103 {offsets = [0, 0], sizes = [2, 96], strides = [1, 1]} : vector<2x128xf32> to vector<2x96xf32>
    %105 = arith.negf %104 : vector<2x96xf32>
    %106 = math.exp %105 : vector<2x96xf32>
    %cst_24 = arith.constant 1.000000e+00 : f32
    %107 = vector.broadcast %cst_24 : f32 to vector<2x96xf32>
    %108 = arith.addf %107, %106 : vector<2x96xf32>
    %109 = arith.divf %107, %108 : vector<2x96xf32>
    %110 = vector.extract_strided_slice %103 {offsets = [0, 96], sizes = [2, 32], strides = [1, 1]} : vector<2x128xf32> to vector<2x32xf32>
    %111 = math.tanh %110 : vector<2x32xf32>
    %112 = vector.extract_strided_slice %109 {offsets = [0, 0], sizes = [2, 32], strides = [1, 1]} : vector<2x96xf32> to vector<2x32xf32>
    %113 = vector.extract_strided_slice %109 {offsets = [0, 32], sizes = [2, 32], strides = [1, 1]} : vector<2x96xf32> to vector<2x32xf32>
    %114 = vector.extract_strided_slice %109 {offsets = [0, 64], sizes = [2, 32], strides = [1, 1]} : vector<2x96xf32> to vector<2x32xf32>
    %115 = arith.mulf %113, %95 : vector<2x32xf32>
    %116 = arith.mulf %112, %111 : vector<2x32xf32>
    %117 = arith.addf %115, %116 : vector<2x32xf32>
    %118 = math.tanh %117 : vector<2x32xf32>
    %119 = arith.mulf %114, %118 : vector<2x32xf32>
    %120 = vector.extract_strided_slice %119 {offsets = [0, 0], sizes = [2, 16], strides = [1, 1]} : vector<2x32xf32> to vector<2x16xf32>
    %c4 = arith.constant 4 : index
    %c0_25 = arith.constant 0 : index
    %121 = vector.load %arg4[%c4, %c0_25] : memref<16x32xf32, #tpu.memory_space<vmem>>, vector<2x16xf32>
    tpu.vector_store %arg4[%c4, %c0_25], %120 {strides = array<i32>} : memref<16x32xf32, #tpu.memory_space<vmem>>, vector<2x16xf32>,
    %122 = vector.extract_strided_slice %119 {offsets = [0, 16], sizes = [2, 16], strides = [1, 1]} : vector<2x32xf32> to vector<2x16xf32>
    %c10 = arith.constant 10 : index
    %c16_26 = arith.constant 16 : index
    %123 = vector.load %arg4[%c10, %c16_26] : memref<16x32xf32, #tpu.memory_space<vmem>>, vector<2x16xf32>
    tpu.vector_store %arg4[%c10, %c16_26], %122 {strides = array<i32>} : memref<16x32xf32, #tpu.memory_space<vmem>>, vector<2x16xf32>,
    %cst_27 = arith.constant dense<0.000000e+00> : vector<2x128xf32>
    %124 = tpu.matmul %119, %0, %cst_27 {dimension_numbers = #tpu.dot_dimension_numbers<[1], [0], [0], [1], [0, 0, 1, 1], [], []>} : vector<2x32xf32>, vector<32x128xf32>, vector<2x128xf32> -> vector<2x128xf32>
    %125 = arith.addf %124, %43 : vector<2x128xf32>
    %126 = vector.extract_strided_slice %125 {offsets = [0, 0], sizes = [2, 96], strides = [1, 1]} : vector<2x128xf32> to vector<2x96xf32>
    %127 = arith.negf %126 : vector<2x96xf32>
    %128 = math.exp %127 : vector<2x96xf32>
    %cst_28 = arith.constant 1.000000e+00 : f32
    %129 = vector.broadcast %cst_28 : f32 to vector<2x96xf32>
    %130 = arith.addf %129, %128 : vector<2x96xf32>
    %131 = arith.divf %129, %130 : vector<2x96xf32>
    %132 = vector.extract_strided_slice %125 {offsets = [0, 96], sizes = [2, 32], strides = [1, 1]} : vector<2x128xf32> to vector<2x32xf32>
    %133 = math.tanh %132 : vector<2x32xf32>
    %134 = vector.extract_strided_slice %131 {offsets = [0, 0], sizes = [2, 32], strides = [1, 1]} : vector<2x96xf32> to vector<2x32xf32>
    %135 = vector.extract_strided_slice %131 {offsets = [0, 32], sizes = [2, 32], strides = [1, 1]} : vector<2x96xf32> to vector<2x32xf32>
    %136 = vector.extract_strided_slice %131 {offsets = [0, 64], sizes = [2, 32], strides = [1, 1]} : vector<2x96xf32> to vector<2x32xf32>
    %137 = arith.mulf %135, %117 : vector<2x32xf32>
    %138 = arith.mulf %134, %133 : vector<2x32xf32>
    %139 = arith.addf %137, %138 : vector<2x32xf32>
    %140 = math.tanh %139 : vector<2x32xf32>
    %141 = arith.mulf %136, %140 : vector<2x32xf32>
    %142 = vector.extract_strided_slice %141 {offsets = [0, 0], sizes = [2, 16], strides = [1, 1]} : vector<2x32xf32> to vector<2x16xf32>
    %c6 = arith.constant 6 : index
    %c0_29 = arith.constant 0 : index
    %143 = vector.load %arg4[%c6, %c0_29] : memref<16x32xf32, #tpu.memory_space<vmem>>, vector<2x16xf32>
    tpu.vector_store %arg4[%c6, %c0_29], %142 {strides = array<i32>} : memref<16x32xf32, #tpu.memory_space<vmem>>, vector<2x16xf32>,
    %144 = vector.extract_strided_slice %141 {offsets = [0, 16], sizes = [2, 16], strides = [1, 1]} : vector<2x32xf32> to vector<2x16xf32>
    %c8 = arith.constant 8 : index
    %c16_30 = arith.constant 16 : index
    %145 = vector.load %arg4[%c8, %c16_30] : memref<16x32xf32, #tpu.memory_space<vmem>>, vector<2x16xf32>
    tpu.vector_store %arg4[%c8, %c16_30], %144 {strides = array<i32>} : memref<16x32xf32, #tpu.memory_space<vmem>>, vector<2x16xf32>,
    %cst_31 = arith.constant dense<0.000000e+00> : vector<2x128xf32>
    %146 = tpu.matmul %141, %0, %cst_31 {dimension_numbers = #tpu.dot_dimension_numbers<[1], [0], [0], [1], [0, 0, 1, 1], [], []>} : vector<2x32xf32>, vector<32x128xf32>, vector<2x128xf32> -> vector<2x128xf32>
    %147 = arith.addf %146, %46 : vector<2x128xf32>
    %148 = vector.extract_strided_slice %147 {offsets = [0, 0], sizes = [2, 96], strides = [1, 1]} : vector<2x128xf32> to vector<2x96xf32>
    %149 = arith.negf %148 : vector<2x96xf32>
    %150 = math.exp %149 : vector<2x96xf32>
    %cst_32 = arith.constant 1.000000e+00 : f32
    %151 = vector.broadcast %cst_32 : f32 to vector<2x96xf32>
    %152 = arith.addf %151, %150 : vector<2x96xf32>
    %153 = arith.divf %151, %152 : vector<2x96xf32>
    %154 = vector.extract_strided_slice %147 {offsets = [0, 96], sizes = [2, 32], strides = [1, 1]} : vector<2x128xf32> to vector<2x32xf32>
    %155 = math.tanh %154 : vector<2x32xf32>
    %156 = vector.extract_strided_slice %153 {offsets = [0, 0], sizes = [2, 32], strides = [1, 1]} : vector<2x96xf32> to vector<2x32xf32>
    %157 = vector.extract_strided_slice %153 {offsets = [0, 32], sizes = [2, 32], strides = [1, 1]} : vector<2x96xf32> to vector<2x32xf32>
    %158 = vector.extract_strided_slice %153 {offsets = [0, 64], sizes = [2, 32], strides = [1, 1]} : vector<2x96xf32> to vector<2x32xf32>
    %159 = arith.mulf %157, %139 : vector<2x32xf32>
    %160 = arith.mulf %156, %155 : vector<2x32xf32>
    %161 = arith.addf %159, %160 : vector<2x32xf32>
    %162 = math.tanh %161 : vector<2x32xf32>
    %163 = arith.mulf %158, %162 : vector<2x32xf32>
    %164 = vector.extract_strided_slice %163 {offsets = [0, 0], sizes = [2, 16], strides = [1, 1]} : vector<2x32xf32> to vector<2x16xf32>
    %c8_33 = arith.constant 8 : index
    %c0_34 = arith.constant 0 : index
    %165 = vector.load %arg4[%c8_33, %c0_34] : memref<16x32xf32, #tpu.memory_space<vmem>>, vector<2x16xf32>
    tpu.vector_store %arg4[%c8_33, %c0_34], %164 {strides = array<i32>} : memref<16x32xf32, #tpu.memory_space<vmem>>, vector<2x16xf32>,
    %166 = vector.extract_strided_slice %163 {offsets = [0, 16], sizes = [2, 16], strides = [1, 1]} : vector<2x32xf32> to vector<2x16xf32>
    %c6_35 = arith.constant 6 : index
    %c16_36 = arith.constant 16 : index
    %167 = vector.load %arg4[%c6_35, %c16_36] : memref<16x32xf32, #tpu.memory_space<vmem>>, vector<2x16xf32>
    tpu.vector_store %arg4[%c6_35, %c16_36], %166 {strides = array<i32>} : memref<16x32xf32, #tpu.memory_space<vmem>>, vector<2x16xf32>,
    %cst_37 = arith.constant dense<0.000000e+00> : vector<2x128xf32>
    %168 = tpu.matmul %163, %0, %cst_37 {dimension_numbers = #tpu.dot_dimension_numbers<[1], [0], [0], [1], [0, 0, 1, 1], [], []>} : vector<2x32xf32>, vector<32x128xf32>, vector<2x128xf32> -> vector<2x128xf32>
    %169 = arith.addf %168, %49 : vector<2x128xf32>
    %170 = vector.extract_strided_slice %169 {offsets = [0, 0], sizes = [2, 96], strides = [1, 1]} : vector<2x128xf32> to vector<2x96xf32>
    %171 = arith.negf %170 : vector<2x96xf32>
    %172 = math.exp %171 : vector<2x96xf32>
    %cst_38 = arith.constant 1.000000e+00 : f32
    %173 = vector.broadcast %cst_38 : f32 to vector<2x96xf32>
    %174 = arith.addf %173, %172 : vector<2x96xf32>
    %175 = arith.divf %173, %174 : vector<2x96xf32>
    %176 = vector.extract_strided_slice %169 {offsets = [0, 96], sizes = [2, 32], strides = [1, 1]} : vector<2x128xf32> to vector<2x32xf32>
    %177 = math.tanh %176 : vector<2x32xf32>
    %178 = vector.extract_strided_slice %175 {offsets = [0, 0], sizes = [2, 32], strides = [1, 1]} : vector<2x96xf32> to vector<2x32xf32>
    %179 = vector.extract_strided_slice %175 {offsets = [0, 32], sizes = [2, 32], strides = [1, 1]} : vector<2x96xf32> to vector<2x32xf32>
    %180 = vector.extract_strided_slice %175 {offsets = [0, 64], sizes = [2, 32], strides = [1, 1]} : vector<2x96xf32> to vector<2x32xf32>
    %181 = arith.mulf %179, %161 : vector<2x32xf32>
    %182 = arith.mulf %178, %177 : vector<2x32xf32>
    %183 = arith.addf %181, %182 : vector<2x32xf32>
    %184 = math.tanh %183 : vector<2x32xf32>
    %185 = arith.mulf %180, %184 : vector<2x32xf32>
    %186 = vector.extract_strided_slice %185 {offsets = [0, 0], sizes = [2, 16], strides = [1, 1]} : vector<2x32xf32> to vector<2x16xf32>
    %c10_39 = arith.constant 10 : index
    %c0_40 = arith.constant 0 : index
    %187 = vector.load %arg4[%c10_39, %c0_40] : memref<16x32xf32, #tpu.memory_space<vmem>>, vector<2x16xf32>
    tpu.vector_store %arg4[%c10_39, %c0_40], %186 {strides = array<i32>} : memref<16x32xf32, #tpu.memory_space<vmem>>, vector<2x16xf32>,
    %188 = vector.extract_strided_slice %185 {offsets = [0, 16], sizes = [2, 16], strides = [1, 1]} : vector<2x32xf32> to vector<2x16xf32>
    %c4_41 = arith.constant 4 : index
    %c16_42 = arith.constant 16 : index
    %189 = vector.load %arg4[%c4_41, %c16_42] : memref<16x32xf32, #tpu.memory_space<vmem>>, vector<2x16xf32>
    tpu.vector_store %arg4[%c4_41, %c16_42], %188 {strides = array<i32>} : memref<16x32xf32, #tpu.memory_space<vmem>>, vector<2x16xf32>,
    %cst_43 = arith.constant dense<0.000000e+00> : vector<2x128xf32>
    %190 = tpu.matmul %185, %0, %cst_43 {dimension_numbers = #tpu.dot_dimension_numbers<[1], [0], [0], [1], [0, 0, 1, 1], [], []>} : vector<2x32xf32>, vector<32x128xf32>, vector<2x128xf32> -> vector<2x128xf32>
    %191 = arith.addf %190, %52 : vector<2x128xf32>
    %192 = vector.extract_strided_slice %191 {offsets = [0, 0], sizes = [2, 96], strides = [1, 1]} : vector<2x128xf32> to vector<2x96xf32>
    %193 = arith.negf %192 : vector<2x96xf32>
    %194 = math.exp %193 : vector<2x96xf32>
    %cst_44 = arith.constant 1.000000e+00 : f32
    %195 = vector.broadcast %cst_44 : f32 to vector<2x96xf32>
    %196 = arith.addf %195, %194 : vector<2x96xf32>
    %197 = arith.divf %195, %196 : vector<2x96xf32>
    %198 = vector.extract_strided_slice %191 {offsets = [0, 96], sizes = [2, 32], strides = [1, 1]} : vector<2x128xf32> to vector<2x32xf32>
    %199 = math.tanh %198 : vector<2x32xf32>
    %200 = vector.extract_strided_slice %197 {offsets = [0, 0], sizes = [2, 32], strides = [1, 1]} : vector<2x96xf32> to vector<2x32xf32>
    %201 = vector.extract_strided_slice %197 {offsets = [0, 32], sizes = [2, 32], strides = [1, 1]} : vector<2x96xf32> to vector<2x32xf32>
    %202 = vector.extract_strided_slice %197 {offsets = [0, 64], sizes = [2, 32], strides = [1, 1]} : vector<2x96xf32> to vector<2x32xf32>
    %203 = arith.mulf %201, %183 : vector<2x32xf32>
    %204 = arith.mulf %200, %199 : vector<2x32xf32>
    %205 = arith.addf %203, %204 : vector<2x32xf32>
    %206 = math.tanh %205 : vector<2x32xf32>
    %207 = arith.mulf %202, %206 : vector<2x32xf32>
    %208 = vector.extract_strided_slice %207 {offsets = [0, 0], sizes = [2, 16], strides = [1, 1]} : vector<2x32xf32> to vector<2x16xf32>
    %c12_45 = arith.constant 12 : index
    %c0_46 = arith.constant 0 : index
    %209 = vector.load %arg4[%c12_45, %c0_46] : memref<16x32xf32, #tpu.memory_space<vmem>>, vector<2x16xf32>
    tpu.vector_store %arg4[%c12_45, %c0_46], %208 {strides = array<i32>} : memref<16x32xf32, #tpu.memory_space<vmem>>, vector<2x16xf32>,
    %210 = vector.extract_strided_slice %207 {offsets = [0, 16], sizes = [2, 16], strides = [1, 1]} : vector<2x32xf32> to vector<2x16xf32>
    %c2_47 = arith.constant 2 : index
    %c16_48 = arith.constant 16 : index
    %211 = vector.load %arg4[%c2_47, %c16_48] : memref<16x32xf32, #tpu.memory_space<vmem>>, vector<2x16xf32>
    tpu.vector_store %arg4[%c2_47, %c16_48], %210 {strides = array<i32>} : memref<16x32xf32, #tpu.memory_space<vmem>>, vector<2x16xf32>,
    %cst_49 = arith.constant dense<0.000000e+00> : vector<2x128xf32>
    %212 = tpu.matmul %207, %0, %cst_49 {dimension_numbers = #tpu.dot_dimension_numbers<[1], [0], [0], [1], [0, 0, 1, 1], [], []>} : vector<2x32xf32>, vector<32x128xf32>, vector<2x128xf32> -> vector<2x128xf32>
    %213 = arith.addf %212, %55 : vector<2x128xf32>
    %214 = vector.extract_strided_slice %213 {offsets = [0, 0], sizes = [2, 96], strides = [1, 1]} : vector<2x128xf32> to vector<2x96xf32>
    %215 = arith.negf %214 : vector<2x96xf32>
    %216 = math.exp %215 : vector<2x96xf32>
    %cst_50 = arith.constant 1.000000e+00 : f32
    %217 = vector.broadcast %cst_50 : f32 to vector<2x96xf32>
    %218 = arith.addf %217, %216 : vector<2x96xf32>
    %219 = arith.divf %217, %218 : vector<2x96xf32>
    %220 = vector.extract_strided_slice %213 {offsets = [0, 96], sizes = [2, 32], strides = [1, 1]} : vector<2x128xf32> to vector<2x32xf32>
    %221 = math.tanh %220 : vector<2x32xf32>
    %222 = vector.extract_strided_slice %219 {offsets = [0, 0], sizes = [2, 32], strides = [1, 1]} : vector<2x96xf32> to vector<2x32xf32>
    %223 = vector.extract_strided_slice %219 {offsets = [0, 32], sizes = [2, 32], strides = [1, 1]} : vector<2x96xf32> to vector<2x32xf32>
    %224 = vector.extract_strided_slice %219 {offsets = [0, 64], sizes = [2, 32], strides = [1, 1]} : vector<2x96xf32> to vector<2x32xf32>
    %225 = arith.mulf %223, %205 : vector<2x32xf32>
    %226 = arith.mulf %222, %221 : vector<2x32xf32>
    %227 = arith.addf %225, %226 : vector<2x32xf32>
    %228 = math.tanh %227 : vector<2x32xf32>
    %229 = arith.mulf %224, %228 : vector<2x32xf32>
    %230 = vector.extract_strided_slice %229 {offsets = [0, 0], sizes = [2, 16], strides = [1, 1]} : vector<2x32xf32> to vector<2x16xf32>
    %c14_51 = arith.constant 14 : index
    %c0_52 = arith.constant 0 : index
    %231 = vector.load %arg4[%c14_51, %c0_52] : memref<16x32xf32, #tpu.memory_space<vmem>>, vector<2x16xf32>
    tpu.vector_store %arg4[%c14_51, %c0_52], %230 {strides = array<i32>} : memref<16x32xf32, #tpu.memory_space<vmem>>, vector<2x16xf32>,
    %232 = vector.extract_strided_slice %229 {offsets = [0, 16], sizes = [2, 16], strides = [1, 1]} : vector<2x32xf32> to vector<2x16xf32>
    %c0_53 = arith.constant 0 : index
    %c16_54 = arith.constant 16 : index
    %233 = vector.load %arg4[%c0_53, %c16_54] : memref<16x32xf32, #tpu.memory_space<vmem>>, vector<2x16xf32>
    tpu.vector_store %arg4[%c0_53, %c16_54], %232 {strides = array<i32>} : memref<16x32xf32, #tpu.memory_space<vmem>>, vector<2x16xf32>,
    %c0_55 = arith.constant 0 : index
    %c0_56 = arith.constant 0 : index
    %234 = vector.load %arg4[%c0_55, %c0_56] : memref<16x32xf32, #tpu.memory_space<vmem>>, vector<16x32xf32>
    %cst_57 = arith.constant 0.000000e+00 : f32
    %235 = vector.broadcast %cst_57 : f32 to vector<16x32xf32>
    %236 = arith.maximumf %234, %235 : vector<16x32xf32>
    %cst_58 = arith.constant dense<0.000000e+00> : vector<16x128xf32>
    %237 = tpu.matmul %236, %1, %cst_58 {dimension_numbers = #tpu.dot_dimension_numbers<[1], [0], [0], [1], [0, 0, 1, 1], [], []>} : vector<16x32xf32>, vector<32x128xf32>, vector<16x128xf32> -> vector<16x128xf32>
    %238 = vector.broadcast %4 : vector<1x128xf32> to vector<16x128xf32>
    %239 = arith.addf %237, %238 : vector<16x128xf32>
    %240 = vector.extract_strided_slice %239 {offsets = [0, 0], sizes = [2, 128], strides = [1, 1]} : vector<16x128xf32> to vector<2x128xf32>
    %241 = vector.extract_strided_slice %239 {offsets = [14, 0], sizes = [2, 128], strides = [1, 1]} : vector<16x128xf32> to vector<2x128xf32>
    %242 = arith.select %26, %240, %241 : vector<2x128xi1>, vector<2x128xf32>
    %243 = vector.extract_strided_slice %239 {offsets = [2, 0], sizes = [2, 128], strides = [1, 1]} : vector<16x128xf32> to vector<2x128xf32>
    %244 = vector.extract_strided_slice %239 {offsets = [12, 0], sizes = [2, 128], strides = [1, 1]} : vector<16x128xf32> to vector<2x128xf32>
    %245 = arith.select %26, %243, %244 : vector<2x128xi1>, vector<2x128xf32>
    %246 = vector.extract_strided_slice %239 {offsets = [4, 0], sizes = [2, 128], strides = [1, 1]} : vector<16x128xf32> to vector<2x128xf32>
    %247 = vector.extract_strided_slice %239 {offsets = [10, 0], sizes = [2, 128], strides = [1, 1]} : vector<16x128xf32> to vector<2x128xf32>
    %248 = arith.select %26, %246, %247 : vector<2x128xi1>, vector<2x128xf32>
    %249 = vector.extract_strided_slice %239 {offsets = [6, 0], sizes = [2, 128], strides = [1, 1]} : vector<16x128xf32> to vector<2x128xf32>
    %250 = vector.extract_strided_slice %239 {offsets = [8, 0], sizes = [2, 128], strides = [1, 1]} : vector<16x128xf32> to vector<2x128xf32>
    %251 = arith.select %26, %249, %250 : vector<2x128xi1>, vector<2x128xf32>
    %252 = vector.extract_strided_slice %239 {offsets = [8, 0], sizes = [2, 128], strides = [1, 1]} : vector<16x128xf32> to vector<2x128xf32>
    %253 = vector.extract_strided_slice %239 {offsets = [6, 0], sizes = [2, 128], strides = [1, 1]} : vector<16x128xf32> to vector<2x128xf32>
    %254 = arith.select %26, %252, %253 : vector<2x128xi1>, vector<2x128xf32>
    %255 = vector.extract_strided_slice %239 {offsets = [10, 0], sizes = [2, 128], strides = [1, 1]} : vector<16x128xf32> to vector<2x128xf32>
    %256 = vector.extract_strided_slice %239 {offsets = [4, 0], sizes = [2, 128], strides = [1, 1]} : vector<16x128xf32> to vector<2x128xf32>
    %257 = arith.select %26, %255, %256 : vector<2x128xi1>, vector<2x128xf32>
    %258 = vector.extract_strided_slice %239 {offsets = [12, 0], sizes = [2, 128], strides = [1, 1]} : vector<16x128xf32> to vector<2x128xf32>
    %259 = vector.extract_strided_slice %239 {offsets = [2, 0], sizes = [2, 128], strides = [1, 1]} : vector<16x128xf32> to vector<2x128xf32>
    %260 = arith.select %26, %258, %259 : vector<2x128xi1>, vector<2x128xf32>
    %261 = vector.extract_strided_slice %239 {offsets = [14, 0], sizes = [2, 128], strides = [1, 1]} : vector<16x128xf32> to vector<2x128xf32>
    %262 = vector.extract_strided_slice %239 {offsets = [0, 0], sizes = [2, 128], strides = [1, 1]} : vector<16x128xf32> to vector<2x128xf32>
    %263 = arith.select %26, %261, %262 : vector<2x128xi1>, vector<2x128xf32>
    %cst_59 = arith.constant 0.000000e+00 : f32
    %264 = vector.broadcast %cst_59 : f32 to vector<2x32xf32>
    %cst_60 = arith.constant 0.000000e+00 : f32
    %265 = vector.broadcast %cst_60 : f32 to vector<2x32xf32>
    %cst_61 = arith.constant dense<0.000000e+00> : vector<2x128xf32>
    %266 = tpu.matmul %264, %2, %cst_61 {dimension_numbers = #tpu.dot_dimension_numbers<[1], [0], [0], [1], [0, 0, 1, 1], [], []>} : vector<2x32xf32>, vector<32x128xf32>, vector<2x128xf32> -> vector<2x128xf32>
    %267 = arith.addf %266, %242 : vector<2x128xf32>
    %268 = vector.extract_strided_slice %267 {offsets = [0, 0], sizes = [2, 96], strides = [1, 1]} : vector<2x128xf32> to vector<2x96xf32>
    %269 = arith.negf %268 : vector<2x96xf32>
    %270 = math.exp %269 : vector<2x96xf32>
    %cst_62 = arith.constant 1.000000e+00 : f32
    %271 = vector.broadcast %cst_62 : f32 to vector<2x96xf32>
    %272 = arith.addf %271, %270 : vector<2x96xf32>
    %273 = arith.divf %271, %272 : vector<2x96xf32>
    %274 = vector.extract_strided_slice %267 {offsets = [0, 96], sizes = [2, 32], strides = [1, 1]} : vector<2x128xf32> to vector<2x32xf32>
    %275 = math.tanh %274 : vector<2x32xf32>
    %276 = vector.extract_strided_slice %273 {offsets = [0, 0], sizes = [2, 32], strides = [1, 1]} : vector<2x96xf32> to vector<2x32xf32>
    %277 = vector.extract_strided_slice %273 {offsets = [0, 32], sizes = [2, 32], strides = [1, 1]} : vector<2x96xf32> to vector<2x32xf32>
    %278 = vector.extract_strided_slice %273 {offsets = [0, 64], sizes = [2, 32], strides = [1, 1]} : vector<2x96xf32> to vector<2x32xf32>
    %279 = arith.mulf %277, %265 : vector<2x32xf32>
    %280 = arith.mulf %276, %275 : vector<2x32xf32>
    %281 = arith.addf %279, %280 : vector<2x32xf32>
    %282 = math.tanh %281 : vector<2x32xf32>
    %283 = arith.mulf %278, %282 : vector<2x32xf32>
    %284 = vector.extract_strided_slice %283 {offsets = [0, 0], sizes = [2, 16], strides = [1, 1]} : vector<2x32xf32> to vector<2x16xf32>
    %c0_63 = arith.constant 0 : index
    %c0_64 = arith.constant 0 : index
    %285 = vector.load %arg5[%c0_63, %c0_64] : memref<16x32xf32, #tpu.memory_space<vmem>>, vector<2x16xf32>
    tpu.vector_store %arg5[%c0_63, %c0_64], %284 {strides = array<i32>} : memref<16x32xf32, #tpu.memory_space<vmem>>, vector<2x16xf32>,
    %286 = vector.extract_strided_slice %283 {offsets = [0, 16], sizes = [2, 16], strides = [1, 1]} : vector<2x32xf32> to vector<2x16xf32>
    %c14_65 = arith.constant 14 : index
    %c16_66 = arith.constant 16 : index
    %287 = vector.load %arg5[%c14_65, %c16_66] : memref<16x32xf32, #tpu.memory_space<vmem>>, vector<2x16xf32>
    tpu.vector_store %arg5[%c14_65, %c16_66], %286 {strides = array<i32>} : memref<16x32xf32, #tpu.memory_space<vmem>>, vector<2x16xf32>,
    %cst_67 = arith.constant dense<0.000000e+00> : vector<2x128xf32>
    %288 = tpu.matmul %283, %2, %cst_67 {dimension_numbers = #tpu.dot_dimension_numbers<[1], [0], [0], [1], [0, 0, 1, 1], [], []>} : vector<2x32xf32>, vector<32x128xf32>, vector<2x128xf32> -> vector<2x128xf32>
    %289 = arith.addf %288, %245 : vector<2x128xf32>
    %290 = vector.extract_strided_slice %289 {offsets = [0, 0], sizes = [2, 96], strides = [1, 1]} : vector<2x128xf32> to vector<2x96xf32>
    %291 = arith.negf %290 : vector<2x96xf32>
    %292 = math.exp %291 : vector<2x96xf32>
    %cst_68 = arith.constant 1.000000e+00 : f32
    %293 = vector.broadcast %cst_68 : f32 to vector<2x96xf32>
    %294 = arith.addf %293, %292 : vector<2x96xf32>
    %295 = arith.divf %293, %294 : vector<2x96xf32>
    %296 = vector.extract_strided_slice %289 {offsets = [0, 96], sizes = [2, 32], strides = [1, 1]} : vector<2x128xf32> to vector<2x32xf32>
    %297 = math.tanh %296 : vector<2x32xf32>
    %298 = vector.extract_strided_slice %295 {offsets = [0, 0], sizes = [2, 32], strides = [1, 1]} : vector<2x96xf32> to vector<2x32xf32>
    %299 = vector.extract_strided_slice %295 {offsets = [0, 32], sizes = [2, 32], strides = [1, 1]} : vector<2x96xf32> to vector<2x32xf32>
    %300 = vector.extract_strided_slice %295 {offsets = [0, 64], sizes = [2, 32], strides = [1, 1]} : vector<2x96xf32> to vector<2x32xf32>
    %301 = arith.mulf %299, %281 : vector<2x32xf32>
    %302 = arith.mulf %298, %297 : vector<2x32xf32>
    %303 = arith.addf %301, %302 : vector<2x32xf32>
    %304 = math.tanh %303 : vector<2x32xf32>
    %305 = arith.mulf %300, %304 : vector<2x32xf32>
    %306 = vector.extract_strided_slice %305 {offsets = [0, 0], sizes = [2, 16], strides = [1, 1]} : vector<2x32xf32> to vector<2x16xf32>
    %c2_69 = arith.constant 2 : index
    %c0_70 = arith.constant 0 : index
    %307 = vector.load %arg5[%c2_69, %c0_70] : memref<16x32xf32, #tpu.memory_space<vmem>>, vector<2x16xf32>
    tpu.vector_store %arg5[%c2_69, %c0_70], %306 {strides = array<i32>} : memref<16x32xf32, #tpu.memory_space<vmem>>, vector<2x16xf32>,
    %308 = vector.extract_strided_slice %305 {offsets = [0, 16], sizes = [2, 16], strides = [1, 1]} : vector<2x32xf32> to vector<2x16xf32>
    %c12_71 = arith.constant 12 : index
    %c16_72 = arith.constant 16 : index
    %309 = vector.load %arg5[%c12_71, %c16_72] : memref<16x32xf32, #tpu.memory_space<vmem>>, vector<2x16xf32>
    tpu.vector_store %arg5[%c12_71, %c16_72], %308 {strides = array<i32>} : memref<16x32xf32, #tpu.memory_space<vmem>>, vector<2x16xf32>,
    %cst_73 = arith.constant dense<0.000000e+00> : vector<2x128xf32>
    %310 = tpu.matmul %305, %2, %cst_73 {dimension_numbers = #tpu.dot_dimension_numbers<[1], [0], [0], [1], [0, 0, 1, 1], [], []>} : vector<2x32xf32>, vector<32x128xf32>, vector<2x128xf32> -> vector<2x128xf32>
    %311 = arith.addf %310, %248 : vector<2x128xf32>
    %312 = vector.extract_strided_slice %311 {offsets = [0, 0], sizes = [2, 96], strides = [1, 1]} : vector<2x128xf32> to vector<2x96xf32>
    %313 = arith.negf %312 : vector<2x96xf32>
    %314 = math.exp %313 : vector<2x96xf32>
    %cst_74 = arith.constant 1.000000e+00 : f32
    %315 = vector.broadcast %cst_74 : f32 to vector<2x96xf32>
    %316 = arith.addf %315, %314 : vector<2x96xf32>
    %317 = arith.divf %315, %316 : vector<2x96xf32>
    %318 = vector.extract_strided_slice %311 {offsets = [0, 96], sizes = [2, 32], strides = [1, 1]} : vector<2x128xf32> to vector<2x32xf32>
    %319 = math.tanh %318 : vector<2x32xf32>
    %320 = vector.extract_strided_slice %317 {offsets = [0, 0], sizes = [2, 32], strides = [1, 1]} : vector<2x96xf32> to vector<2x32xf32>
    %321 = vector.extract_strided_slice %317 {offsets = [0, 32], sizes = [2, 32], strides = [1, 1]} : vector<2x96xf32> to vector<2x32xf32>
    %322 = vector.extract_strided_slice %317 {offsets = [0, 64], sizes = [2, 32], strides = [1, 1]} : vector<2x96xf32> to vector<2x32xf32>
    %323 = arith.mulf %321, %303 : vector<2x32xf32>
    %324 = arith.mulf %320, %319 : vector<2x32xf32>
    %325 = arith.addf %323, %324 : vector<2x32xf32>
    %326 = math.tanh %325 : vector<2x32xf32>
    %327 = arith.mulf %322, %326 : vector<2x32xf32>
    %328 = vector.extract_strided_slice %327 {offsets = [0, 0], sizes = [2, 16], strides = [1, 1]} : vector<2x32xf32> to vector<2x16xf32>
    %c4_75 = arith.constant 4 : index
    %c0_76 = arith.constant 0 : index
    %329 = vector.load %arg5[%c4_75, %c0_76] : memref<16x32xf32, #tpu.memory_space<vmem>>, vector<2x16xf32>
    tpu.vector_store %arg5[%c4_75, %c0_76], %328 {strides = array<i32>} : memref<16x32xf32, #tpu.memory_space<vmem>>, vector<2x16xf32>,
    %330 = vector.extract_strided_slice %327 {offsets = [0, 16], sizes = [2, 16], strides = [1, 1]} : vector<2x32xf32> to vector<2x16xf32>
    %c10_77 = arith.constant 10 : index
    %c16_78 = arith.constant 16 : index
    %331 = vector.load %arg5[%c10_77, %c16_78] : memref<16x32xf32, #tpu.memory_space<vmem>>, vector<2x16xf32>
    tpu.vector_store %arg5[%c10_77, %c16_78], %330 {strides = array<i32>} : memref<16x32xf32, #tpu.memory_space<vmem>>, vector<2x16xf32>,
    %cst_79 = arith.constant dense<0.000000e+00> : vector<2x128xf32>
    %332 = tpu.matmul %327, %2, %cst_79 {dimension_numbers = #tpu.dot_dimension_numbers<[1], [0], [0], [1], [0, 0, 1, 1], [], []>} : vector<2x32xf32>, vector<32x128xf32>, vector<2x128xf32> -> vector<2x128xf32>
    %333 = arith.addf %332, %251 : vector<2x128xf32>
    %334 = vector.extract_strided_slice %333 {offsets = [0, 0], sizes = [2, 96], strides = [1, 1]} : vector<2x128xf32> to vector<2x96xf32>
    %335 = arith.negf %334 : vector<2x96xf32>
    %336 = math.exp %335 : vector<2x96xf32>
    %cst_80 = arith.constant 1.000000e+00 : f32
    %337 = vector.broadcast %cst_80 : f32 to vector<2x96xf32>
    %338 = arith.addf %337, %336 : vector<2x96xf32>
    %339 = arith.divf %337, %338 : vector<2x96xf32>
    %340 = vector.extract_strided_slice %333 {offsets = [0, 96], sizes = [2, 32], strides = [1, 1]} : vector<2x128xf32> to vector<2x32xf32>
    %341 = math.tanh %340 : vector<2x32xf32>
    %342 = vector.extract_strided_slice %339 {offsets = [0, 0], sizes = [2, 32], strides = [1, 1]} : vector<2x96xf32> to vector<2x32xf32>
    %343 = vector.extract_strided_slice %339 {offsets = [0, 32], sizes = [2, 32], strides = [1, 1]} : vector<2x96xf32> to vector<2x32xf32>
    %344 = vector.extract_strided_slice %339 {offsets = [0, 64], sizes = [2, 32], strides = [1, 1]} : vector<2x96xf32> to vector<2x32xf32>
    %345 = arith.mulf %343, %325 : vector<2x32xf32>
    %346 = arith.mulf %342, %341 : vector<2x32xf32>
    %347 = arith.addf %345, %346 : vector<2x32xf32>
    %348 = math.tanh %347 : vector<2x32xf32>
    %349 = arith.mulf %344, %348 : vector<2x32xf32>
    %350 = vector.extract_strided_slice %349 {offsets = [0, 0], sizes = [2, 16], strides = [1, 1]} : vector<2x32xf32> to vector<2x16xf32>
    %c6_81 = arith.constant 6 : index
    %c0_82 = arith.constant 0 : index
    %351 = vector.load %arg5[%c6_81, %c0_82] : memref<16x32xf32, #tpu.memory_space<vmem>>, vector<2x16xf32>
    tpu.vector_store %arg5[%c6_81, %c0_82], %350 {strides = array<i32>} : memref<16x32xf32, #tpu.memory_space<vmem>>, vector<2x16xf32>,
    %352 = vector.extract_strided_slice %349 {offsets = [0, 16], sizes = [2, 16], strides = [1, 1]} : vector<2x32xf32> to vector<2x16xf32>
    %c8_83 = arith.constant 8 : index
    %c16_84 = arith.constant 16 : index
    %353 = vector.load %arg5[%c8_83, %c16_84] : memref<16x32xf32, #tpu.memory_space<vmem>>, vector<2x16xf32>
    tpu.vector_store %arg5[%c8_83, %c16_84], %352 {strides = array<i32>} : memref<16x32xf32, #tpu.memory_space<vmem>>, vector<2x16xf32>,
    %cst_85 = arith.constant dense<0.000000e+00> : vector<2x128xf32>
    %354 = tpu.matmul %349, %2, %cst_85 {dimension_numbers = #tpu.dot_dimension_numbers<[1], [0], [0], [1], [0, 0, 1, 1], [], []>} : vector<2x32xf32>, vector<32x128xf32>, vector<2x128xf32> -> vector<2x128xf32>
    %355 = arith.addf %354, %254 : vector<2x128xf32>
    %356 = vector.extract_strided_slice %355 {offsets = [0, 0], sizes = [2, 96], strides = [1, 1]} : vector<2x128xf32> to vector<2x96xf32>
    %357 = arith.negf %356 : vector<2x96xf32>
    %358 = math.exp %357 : vector<2x96xf32>
    %cst_86 = arith.constant 1.000000e+00 : f32
    %359 = vector.broadcast %cst_86 : f32 to vector<2x96xf32>
    %360 = arith.addf %359, %358 : vector<2x96xf32>
    %361 = arith.divf %359, %360 : vector<2x96xf32>
    %362 = vector.extract_strided_slice %355 {offsets = [0, 96], sizes = [2, 32], strides = [1, 1]} : vector<2x128xf32> to vector<2x32xf32>
    %363 = math.tanh %362 : vector<2x32xf32>
    %364 = vector.extract_strided_slice %361 {offsets = [0, 0], sizes = [2, 32], strides = [1, 1]} : vector<2x96xf32> to vector<2x32xf32>
    %365 = vector.extract_strided_slice %361 {offsets = [0, 32], sizes = [2, 32], strides = [1, 1]} : vector<2x96xf32> to vector<2x32xf32>
    %366 = vector.extract_strided_slice %361 {offsets = [0, 64], sizes = [2, 32], strides = [1, 1]} : vector<2x96xf32> to vector<2x32xf32>
    %367 = arith.mulf %365, %347 : vector<2x32xf32>
    %368 = arith.mulf %364, %363 : vector<2x32xf32>
    %369 = arith.addf %367, %368 : vector<2x32xf32>
    %370 = math.tanh %369 : vector<2x32xf32>
    %371 = arith.mulf %366, %370 : vector<2x32xf32>
    %372 = vector.extract_strided_slice %371 {offsets = [0, 0], sizes = [2, 16], strides = [1, 1]} : vector<2x32xf32> to vector<2x16xf32>
    %c8_87 = arith.constant 8 : index
    %c0_88 = arith.constant 0 : index
    %373 = vector.load %arg5[%c8_87, %c0_88] : memref<16x32xf32, #tpu.memory_space<vmem>>, vector<2x16xf32>
    tpu.vector_store %arg5[%c8_87, %c0_88], %372 {strides = array<i32>} : memref<16x32xf32, #tpu.memory_space<vmem>>, vector<2x16xf32>,
    %374 = vector.extract_strided_slice %371 {offsets = [0, 16], sizes = [2, 16], strides = [1, 1]} : vector<2x32xf32> to vector<2x16xf32>
    %c6_89 = arith.constant 6 : index
    %c16_90 = arith.constant 16 : index
    %375 = vector.load %arg5[%c6_89, %c16_90] : memref<16x32xf32, #tpu.memory_space<vmem>>, vector<2x16xf32>
    tpu.vector_store %arg5[%c6_89, %c16_90], %374 {strides = array<i32>} : memref<16x32xf32, #tpu.memory_space<vmem>>, vector<2x16xf32>,
    %cst_91 = arith.constant dense<0.000000e+00> : vector<2x128xf32>
    %376 = tpu.matmul %371, %2, %cst_91 {dimension_numbers = #tpu.dot_dimension_numbers<[1], [0], [0], [1], [0, 0, 1, 1], [], []>} : vector<2x32xf32>, vector<32x128xf32>, vector<2x128xf32> -> vector<2x128xf32>
    %377 = arith.addf %376, %257 : vector<2x128xf32>
    %378 = vector.extract_strided_slice %377 {offsets = [0, 0], sizes = [2, 96], strides = [1, 1]} : vector<2x128xf32> to vector<2x96xf32>
    %379 = arith.negf %378 : vector<2x96xf32>
    %380 = math.exp %379 : vector<2x96xf32>
    %cst_92 = arith.constant 1.000000e+00 : f32
    %381 = vector.broadcast %cst_92 : f32 to vector<2x96xf32>
    %382 = arith.addf %381, %380 : vector<2x96xf32>
    %383 = arith.divf %381, %382 : vector<2x96xf32>
    %384 = vector.extract_strided_slice %377 {offsets = [0, 96], sizes = [2, 32], strides = [1, 1]} : vector<2x128xf32> to vector<2x32xf32>
    %385 = math.tanh %384 : vector<2x32xf32>
    %386 = vector.extract_strided_slice %383 {offsets = [0, 0], sizes = [2, 32], strides = [1, 1]} : vector<2x96xf32> to vector<2x32xf32>
    %387 = vector.extract_strided_slice %383 {offsets = [0, 32], sizes = [2, 32], strides = [1, 1]} : vector<2x96xf32> to vector<2x32xf32>
    %388 = vector.extract_strided_slice %383 {offsets = [0, 64], sizes = [2, 32], strides = [1, 1]} : vector<2x96xf32> to vector<2x32xf32>
    %389 = arith.mulf %387, %369 : vector<2x32xf32>
    %390 = arith.mulf %386, %385 : vector<2x32xf32>
    %391 = arith.addf %389, %390 : vector<2x32xf32>
    %392 = math.tanh %391 : vector<2x32xf32>
    %393 = arith.mulf %388, %392 : vector<2x32xf32>
    %394 = vector.extract_strided_slice %393 {offsets = [0, 0], sizes = [2, 16], strides = [1, 1]} : vector<2x32xf32> to vector<2x16xf32>
    %c10_93 = arith.constant 10 : index
    %c0_94 = arith.constant 0 : index
    %395 = vector.load %arg5[%c10_93, %c0_94] : memref<16x32xf32, #tpu.memory_space<vmem>>, vector<2x16xf32>
    tpu.vector_store %arg5[%c10_93, %c0_94], %394 {strides = array<i32>} : memref<16x32xf32, #tpu.memory_space<vmem>>, vector<2x16xf32>,
    %396 = vector.extract_strided_slice %393 {offsets = [0, 16], sizes = [2, 16], strides = [1, 1]} : vector<2x32xf32> to vector<2x16xf32>
    %c4_95 = arith.constant 4 : index
    %c16_96 = arith.constant 16 : index
    %397 = vector.load %arg5[%c4_95, %c16_96] : memref<16x32xf32, #tpu.memory_space<vmem>>, vector<2x16xf32>
    tpu.vector_store %arg5[%c4_95, %c16_96], %396 {strides = array<i32>} : memref<16x32xf32, #tpu.memory_space<vmem>>, vector<2x16xf32>,
    %cst_97 = arith.constant dense<0.000000e+00> : vector<2x128xf32>
    %398 = tpu.matmul %393, %2, %cst_97 {dimension_numbers = #tpu.dot_dimension_numbers<[1], [0], [0], [1], [0, 0, 1, 1], [], []>} : vector<2x32xf32>, vector<32x128xf32>, vector<2x128xf32> -> vector<2x128xf32>
    %399 = arith.addf %398, %260 : vector<2x128xf32>
    %400 = vector.extract_strided_slice %399 {offsets = [0, 0], sizes = [2, 96], strides = [1, 1]} : vector<2x128xf32> to vector<2x96xf32>
    %401 = arith.negf %400 : vector<2x96xf32>
    %402 = math.exp %401 : vector<2x96xf32>
    %cst_98 = arith.constant 1.000000e+00 : f32
    %403 = vector.broadcast %cst_98 : f32 to vector<2x96xf32>
    %404 = arith.addf %403, %402 : vector<2x96xf32>
    %405 = arith.divf %403, %404 : vector<2x96xf32>
    %406 = vector.extract_strided_slice %399 {offsets = [0, 96], sizes = [2, 32], strides = [1, 1]} : vector<2x128xf32> to vector<2x32xf32>
    %407 = math.tanh %406 : vector<2x32xf32>
    %408 = vector.extract_strided_slice %405 {offsets = [0, 0], sizes = [2, 32], strides = [1, 1]} : vector<2x96xf32> to vector<2x32xf32>
    %409 = vector.extract_strided_slice %405 {offsets = [0, 32], sizes = [2, 32], strides = [1, 1]} : vector<2x96xf32> to vector<2x32xf32>
    %410 = vector.extract_strided_slice %405 {offsets = [0, 64], sizes = [2, 32], strides = [1, 1]} : vector<2x96xf32> to vector<2x32xf32>
    %411 = arith.mulf %409, %391 : vector<2x32xf32>
    %412 = arith.mulf %408, %407 : vector<2x32xf32>
    %413 = arith.addf %411, %412 : vector<2x32xf32>
    %414 = math.tanh %413 : vector<2x32xf32>
    %415 = arith.mulf %410, %414 : vector<2x32xf32>
    %416 = vector.extract_strided_slice %415 {offsets = [0, 0], sizes = [2, 16], strides = [1, 1]} : vector<2x32xf32> to vector<2x16xf32>
    %c12_99 = arith.constant 12 : index
    %c0_100 = arith.constant 0 : index
    %417 = vector.load %arg5[%c12_99, %c0_100] : memref<16x32xf32, #tpu.memory_space<vmem>>, vector<2x16xf32>
    tpu.vector_store %arg5[%c12_99, %c0_100], %416 {strides = array<i32>} : memref<16x32xf32, #tpu.memory_space<vmem>>, vector<2x16xf32>,
    %418 = vector.extract_strided_slice %415 {offsets = [0, 16], sizes = [2, 16], strides = [1, 1]} : vector<2x32xf32> to vector<2x16xf32>
    %c2_101 = arith.constant 2 : index
    %c16_102 = arith.constant 16 : index
    %419 = vector.load %arg5[%c2_101, %c16_102] : memref<16x32xf32, #tpu.memory_space<vmem>>, vector<2x16xf32>
    tpu.vector_store %arg5[%c2_101, %c16_102], %418 {strides = array<i32>} : memref<16x32xf32, #tpu.memory_space<vmem>>, vector<2x16xf32>,
    %cst_103 = arith.constant dense<0.000000e+00> : vector<2x128xf32>
    %420 = tpu.matmul %415, %2, %cst_103 {dimension_numbers = #tpu.dot_dimension_numbers<[1], [0], [0], [1], [0, 0, 1, 1], [], []>} : vector<2x32xf32>, vector<32x128xf32>, vector<2x128xf32> -> vector<2x128xf32>
    %421 = arith.addf %420, %263 : vector<2x128xf32>
    %422 = vector.extract_strided_slice %421 {offsets = [0, 0], sizes = [2, 96], strides = [1, 1]} : vector<2x128xf32> to vector<2x96xf32>
    %423 = arith.negf %422 : vector<2x96xf32>
    %424 = math.exp %423 : vector<2x96xf32>
    %cst_104 = arith.constant 1.000000e+00 : f32
    %425 = vector.broadcast %cst_104 : f32 to vector<2x96xf32>
    %426 = arith.addf %425, %424 : vector<2x96xf32>
    %427 = arith.divf %425, %426 : vector<2x96xf32>
    %428 = vector.extract_strided_slice %421 {offsets = [0, 96], sizes = [2, 32], strides = [1, 1]} : vector<2x128xf32> to vector<2x32xf32>
    %429 = math.tanh %428 : vector<2x32xf32>
    %430 = vector.extract_strided_slice %427 {offsets = [0, 0], sizes = [2, 32], strides = [1, 1]} : vector<2x96xf32> to vector<2x32xf32>
    %431 = vector.extract_strided_slice %427 {offsets = [0, 32], sizes = [2, 32], strides = [1, 1]} : vector<2x96xf32> to vector<2x32xf32>
    %432 = vector.extract_strided_slice %427 {offsets = [0, 64], sizes = [2, 32], strides = [1, 1]} : vector<2x96xf32> to vector<2x32xf32>
    %433 = arith.mulf %431, %413 : vector<2x32xf32>
    %434 = arith.mulf %430, %429 : vector<2x32xf32>
    %435 = arith.addf %433, %434 : vector<2x32xf32>
    %436 = math.tanh %435 : vector<2x32xf32>
    %437 = arith.mulf %432, %436 : vector<2x32xf32>
    %438 = vector.extract_strided_slice %437 {offsets = [0, 0], sizes = [2, 16], strides = [1, 1]} : vector<2x32xf32> to vector<2x16xf32>
    %c14_105 = arith.constant 14 : index
    %c0_106 = arith.constant 0 : index
    %439 = vector.load %arg5[%c14_105, %c0_106] : memref<16x32xf32, #tpu.memory_space<vmem>>, vector<2x16xf32>
    tpu.vector_store %arg5[%c14_105, %c0_106], %438 {strides = array<i32>} : memref<16x32xf32, #tpu.memory_space<vmem>>, vector<2x16xf32>,
    %440 = vector.extract_strided_slice %437 {offsets = [0, 16], sizes = [2, 16], strides = [1, 1]} : vector<2x32xf32> to vector<2x16xf32>
    %c0_107 = arith.constant 0 : index
    %c16_108 = arith.constant 16 : index
    %441 = vector.load %arg5[%c0_107, %c16_108] : memref<16x32xf32, #tpu.memory_space<vmem>>, vector<2x16xf32>
    tpu.vector_store %arg5[%c0_107, %c16_108], %440 {strides = array<i32>} : memref<16x32xf32, #tpu.memory_space<vmem>>, vector<2x16xf32>,
    %c0_109 = arith.constant 0 : index
    %c0_110 = arith.constant 0 : index
    %442 = vector.load %arg5[%c0_109, %c0_110] : memref<16x32xf32, #tpu.memory_space<vmem>>, vector<16x32xf32>
    %cst_111 = arith.constant 0.000000e+00 : f32
    %443 = vector.broadcast %cst_111 : f32 to vector<16x32xf32>
    %444 = arith.maximumf %442, %443 : vector<16x32xf32>
    %445 = vector.broadcast %6 : vector<1x32xf32> to vector<16x32xf32>
    %446 = arith.mulf %444, %445 : vector<16x32xf32>
    %cst_112 = arith.constant dense<0.000000e+00> : vector<16xf32>
    %447 = vector.multi_reduction <add>, %446, %cst_112 [1] : vector<16x32xf32> to vector<16xf32>
    %448 = vector.shape_cast %447 : vector<16xf32> to vector<16x1xf32>
    %449 = vector.broadcast %7 : vector<1x1xf32> to vector<16x1xf32>
    %450 = arith.addf %448, %449 : vector<16x1xf32>
    %451 = arith.negf %450 : vector<16x1xf32>
    %452 = math.exp %451 : vector<16x1xf32>
    %cst_113 = arith.constant 1.000000e+00 : f32
    %453 = vector.broadcast %cst_113 : f32 to vector<16x1xf32>
    %454 = arith.addf %453, %452 : vector<16x1xf32>
    %455 = arith.divf %453, %454 : vector<16x1xf32>
    %c0_114 = arith.constant 0 : index
    %c0_115 = arith.constant 0 : index
    %456 = vector.load %arg3[%c0_114, %c0_115] : memref<16x1xf32, #tpu.memory_space<vmem>>, vector<16x1xf32>
    tpu.vector_store %arg3[%c0_114, %c0_115], %455 {strides = array<i32>} : memref<16x1xf32, #tpu.memory_space<vmem>>, vector<16x1xf32>,
    return
  }
}

</mosaic_0001>

<llo_original>
// kernel: tpu_custom_call.1
$region0: #{tpu_custom_call.1}
  #allocation0 [shape = 'u32[]', space=smem, size = 0x4, offset = 0x4, fixed_abs, tag = 'smem constant byte address 0x4 - core index']
  #allocation1 [shape = 'u32[72,128]{1,0:T(1,128)}', space=vmem, size = 0x9000, scoped, tag = 'internal scratch']
  #allocation2 [shape = 'f32[16,32]{1,0:T(8,128)}', space=vmem, size = 0x2000, scoped, tag = 'scratch operand']
  #allocation3 [shape = 'f32[16,32]{1,0:T(8,128)}', space=vmem, size = 0x2000, scoped, tag = 'scratch operand']
  %s0 = inlined_call_operand.hbm [shape: f32[16,100], index: 0, kind: input, shape index: {}]
  %s1 = inlined_call_operand.hbm [shape: f32[100,128], index: 1, kind: input, shape index: {}]
  %s2 = inlined_call_operand.hbm [shape: f32[99,128], index: 2, kind: input, shape index: {}]
  %s3 = inlined_call_operand.vmem [shape: f32[16,1], index: 3, kind: output, shape index: {}]
  %s4 = sld [smem:[#allocation0]]
  $region34: #{tpu_custom_call.1} parent=0
    _
  %s6 = ssub.s32 1, %s4
  %s7 = scalar_select 0, %s6, %s4
  $region1: #{tpu_custom_call.1} parent=0
    #allocation4 [shape = 'u8[8192]{0}', space=vmem, size = 0x2000, scoped, tag = 'input window, operand 0, single buffered']
    #allocation5 [shape = 's32[1]{0}', space=sflag, size = 0x4, scoped, tag = 'scoped memory for tpu_custom_call.1']
    #allocation6 [shape = 'u8[53248]{0}', space=vmem, size = 0xd000, scoped, tag = 'input window, operand 1, single buffered']
    #allocation7 [shape = 's32[1]{0}', space=sflag, size = 0x4, scoped, tag = 'scoped memory for tpu_custom_call.1']
    #allocation8 [shape = 'u8[53248]{0}', space=vmem, size = 0xd000, scoped, tag = 'input window, operand 2, single buffered']
    %8 = vsyncpa [#allocation5], 0
    %9 = vsyncpa [#allocation7], 0
    // Predicated region
    $region2: #{tpu_custom_call.1} parent=1 // pred_check
      _
    $region3: #{tpu_custom_call.1} parent=1 // pred_check_branch
      %11 = sbr.rel (0) target = $region5
    $region4: #{tpu_custom_call.1} parent=1 // pred_region
      %13 = vsyncadd [#allocation5], 0
      %s14 = sshll.u32 %s0, 4
      %s15 = int_to_ptr.hbm [resolvable:$true] %s14
      %s16 = sshll.u32 [#allocation4], 4
      %s17 = int_to_ptr.vmem [resolvable:$true] %s16
      %22 = dma.hbm_to_vmem [thread:$0]  %s15, 256, %s17, [#allocation5], 128, 128, 8
    $region5: #{tpu_custom_call.1} parent=1 // pred_fallthru
      _
    // Predicated region
    $region6: #{tpu_custom_call.1} parent=1 // pred_check
      _
    $region7: #{tpu_custom_call.1} parent=1 // pred_check_branch
      %24 = sbr.rel (0) target = $region9
    $region8: #{tpu_custom_call.1} parent=1 // pred_region
      %26 = vsyncadd [#allocation7], 0
      %s27 = sshll.u32 %s1, 4
      %s28 = int_to_ptr.hbm [resolvable:$true] %s27
      %s29 = sshll.u32 [#allocation6], 4
      %s30 = int_to_ptr.vmem [resolvable:$true] %s29
      %35 = dma.hbm_to_vmem [thread:$0]  %s28, 1664, %s30, [#allocation7], 128, 128, 8
    $region9: #{tpu_custom_call.1} parent=1 // pred_fallthru
      _
    // Predicated region
    $region10: #{tpu_custom_call.1} parent=1 // pred_check
      _
    $region11: #{tpu_custom_call.1} parent=1 // pred_check_branch
      %37 = sbr.rel (0) target = $region13
    $region12: #{tpu_custom_call.1} parent=1 // pred_region
      %39 = vsyncadd [#allocation7], 0
      %s40 = sshll.u32 %s2, 4
      %s41 = int_to_ptr.hbm [resolvable:$true] %s40
      %s42 = sshll.u32 [#allocation8], 4
      %s43 = int_to_ptr.vmem [resolvable:$true] %s42
      %48 = dma.hbm_to_vmem [thread:$0]  %s41, 1664, %s43, [#allocation7], 128, 128, 8
    $region13: #{tpu_custom_call.1} parent=1 // pred_fallthru
      _
    // Predicated region
    $region14: #{tpu_custom_call.1} parent=1 // pred_check
      _
    $region15: #{tpu_custom_call.1} parent=1 // pred_check_branch
      %50 = sbr.rel (0) target = $region17
    $region16: #{tpu_custom_call.1} parent=1 // pred_region
      %52 = dma.done [#allocation5], 256
    $region17: #{tpu_custom_call.1} parent=1 // pred_fallthru
      _
    // Predicated region
    $region18: #{tpu_custom_call.1} parent=1 // pred_check
      _
    $region19: #{tpu_custom_call.1} parent=1 // pred_check_branch
      %54 = sbr.rel (0) target = $region21
    $region20: #{tpu_custom_call.1} parent=1 // pred_region
      %56 = dma.done [#allocation7], 1664
    $region21: #{tpu_custom_call.1} parent=1 // pred_fallthru
      _
    // Predicated region
    $region22: #{tpu_custom_call.1} parent=1 // pred_check
      _
    $region23: #{tpu_custom_call.1} parent=1 // pred_check_branch
      %58 = sbr.rel (0) target = $region25
    $region24: #{tpu_custom_call.1} parent=1 // pred_region
      %60 = dma.done [#allocation7], 1664
    $region25: #{tpu_custom_call.1} parent=1 // pred_fallthru
      _
    %v61 = vld [vmem:[#allocation8] sm:$0xff]
    %v62 = vld [vmem:[#allocation8 + $0x8] sm:$0xff]
    %v63 = vld [vmem:[#allocation8 + $0x10] sm:$0xff]
    %v64 = vld [vmem:[#allocation8 + $0x18] sm:$0xff]
    %v65 = vld [vmem:[#allocation8 + $0x20] sm:$0xff]
    %v66 = vld [vmem:[#allocation8 + $0x28] sm:$0xff]
    %v67 = vld [vmem:[#allocation8 + $0x30] sm:$0xff]
    %v68 = vld [vmem:[#allocation8 + $0x38] sm:$0xff]
    %v69 = vld [vmem:[#allocation8 + $0x40] sm:$0xff]
    %v70 = vld [vmem:[#allocation8 + $0x48] sm:$0xff]
    %v71 = vld [vmem:[#allocation8 + $0x50] sm:$0xff]
    %v72 = vld [vmem:[#allocation8 + $0x58] sm:$0xff]
    %v73 = vld [vmem:[#allocation8 + $0x60] sm:$0x1]
    %v74 = vld [vmem:[#allocation8 + $0x61] sm:$0x1]
    %v75 = vld [vmem:[#allocation8 + $0x62] sm:$0x1]
    %v76 = vlaneseq
    %v77 = vand.u32 %v76, 127
    %vm78 = vcmp.lt.s32.totalorder %v77, 0
    %v79 = vsub.s32 0, %v77
    %v80 = vsel %vm78, %v79, %v77
    %v81 = vshrl.u32 %v80, 5
    %v82 = vand.u32 %v80, 31
    %v83 = vsub.s32 0, %v82
    %v84 = vsel %vm78, %v83, %v82
    %vm85 = vcmp.ne.s32.totalorder %v84, 0
    %vm86 = vcmp.lt.s32.totalorder %v84, 0
    %vm87 = vmand %vm86, %vm85
    %v88 = vadd.s32 %v84, 32
    %v89 = vsel %vm87, %v88, %v84
    %vm90 = vcmp.lt.s32.totalorder %v89, 16
    %v91 = vld [vmem:[#allocation4] sm:$0xff]
    %v92 = vld [vmem:[#allocation4 + $0x8] sm:$0xff]
    %v93 = vld [vmem:[#allocation6] sm:$0xff]
    %v94 = vld [vmem:[#allocation6 + $0x8] sm:$0xff]
    %v95 = vld [vmem:[#allocation6 + $0x10] sm:$0xff]
    %v96 = vld [vmem:[#allocation6 + $0x18] sm:$0xff]
    %v97 = vld [vmem:[#allocation6 + $0x20] sm:$0xff]
    %v98 = vld [vmem:[#allocation6 + $0x28] sm:$0xff]
    %v99 = vld [vmem:[#allocation6 + $0x30] sm:$0xff]
    %v100 = vld [vmem:[#allocation6 + $0x38] sm:$0xff]
    %v101 = vld [vmem:[#allocation6 + $0x40] sm:$0xff]
    %v102 = vld [vmem:[#allocation6 + $0x48] sm:$0xff]
    %v103 = vld [vmem:[#allocation6 + $0x50] sm:$0xff]
    %v104 = vld [vmem:[#allocation6 + $0x58] sm:$0xff]
    %v105 = vld [vmem:[#allocation6 + $0x60] sm:$0xf]
    %v106 = vperm.slane %v73, 0
    %vm107 = vcmask 818176
    %v109 = vsel %vm107, %v91, 0
    %v112 = vsel %vm107, %v92, 0
    %vm114 = vcmask 1043456
    %v116 = vsel %vm114, %v105, 0
    %118 = vmatpush.msra.mxu0 0.0
    %119 = vmatpush.msra.mxu0 0.0
    %120 = vmatpush.msra.mxu0 0.0
    %121 = vmatpush.msra.mxu0 %v116
    %122 = vmatpush.msra.mxu0 %v104
    %123 = vmatpush.msra.mxu0 %v103
    %124 = vmatpush.msra.mxu0 %v102
    %125 = vmatpush.msra.mxu0 %v101
    %126 = vmatpush.msra.mxu0 %v100
    %127 = vmatpush.msra.mxu0 %v99
    %128 = vmatpush.msra.mxu0 %v98
    %129 = vmatpush.msra.mxu0 %v97
    %130 = vmatpush.msra.mxu0 %v96
    %131 = vmatpush.msra.mxu0 %v95
    %132 = vmatpush.msra.mxu0 %v94
    %133 = vmatpush.msra.mxu0 %v93
    %134 = vmatmul.f32.gmra.mxu0 %v109
    %v135 = vpop.f32.mrf.mxu0
    %v136 = vadd.f32 %v106, %v135
    %137 = vmatmul.f32.gmra.mxu0 %v112
    %v138 = vpop.f32.mrf.mxu0
    %v139 = vadd.f32 %v106, %v138
    %140 = vdwg.mxu0
    %v142 = vrot.slane %v139, 6
    %v144 = vsel %vm90, %v136, %v142
    %v145 = vrot.slane %v139, 2
    %v147 = vsel %vm90, %v136, %v145
    %v149 = vrot.slane %v136, 6
    %v151 = vsel %vm90, %v139, %v149
    %v152 = vrot.slane %v136, 2
    %v154 = vsel %vm90, %v139, %v152
    %vm155 = vcmask 261120
    %v157 = vsel %vm155, 0.0, 0
    %159 = vmatpush.msra.mxu0 0.0
    %160 = vmatpush.msra.mxu0 0.0
    %161 = vmatpush.msra.mxu0 0.0
    %162 = vmatpush.msra.mxu0 0.0
    %163 = vmatpush.msra.mxu0 0.0
    %164 = vmatpush.msra.mxu0 0.0
    %165 = vmatpush.msra.mxu0 0.0
    %166 = vmatpush.msra.mxu0 0.0
    %167 = vmatpush.msra.mxu0 0.0
    %168 = vmatpush.msra.mxu0 0.0
    %169 = vmatpush.msra.mxu0 0.0
    %170 = vmatpush.msra.mxu0 0.0
    %171 = vmatpush.msra.mxu0 %v64
    %172 = vmatpush.msra.mxu0 %v63
    %173 = vmatpush.msra.mxu0 %v62
    %174 = vmatpush.msra.mxu0 %v61
    %175 = vmatmul.f32.gmra.mxu0 %v157
    %v176 = vpop.f32.mrf.mxu0
    %v177 = vadd.f32 %v144, %v176
    %178 = vdwg.mxu0
    %v179 = vxor.u32 %v177, 2147483648
    %v180 = vmul.f32 %v179, 1.442695
    %v181 = vpow.pop %v180
    %v182 = vadd.f32 %v181, 1.0
    %v183 = vrcp.pop %v182
    %v184 = vmul.f32 %v182, %v183
    %v185 = vsub.f32 1.0, %v184
    %v186 = vmul.f32 %v183, %v185
    %v187 = vadd.f32 %v183, %v186
    %vm188 = vweird.f32 %v182
    %vm189 = vweird.f32 %v183
    %vm190 = vmor %vm188, %vm189
    %v191 = vsel %vm190, %v183, %v187
    %v192 = vand.u32 2147483647, %v182
    %vm193 = vcmp.eq.f32.partialorder %v192, 8.507059e+37
    %v194 = vand.u32 %v182, 2147483648
    %v195 = vor.u32 1.1754944e-38, %v194
    %v196 = vsel %vm193, %v195, %v191
    %v197 = vmul.f32 1.0, %v196
    %v198 = vtanh.pop %v177
    %v199 = vmul.f32 %v197, 0.0
    %201 = vrot.lane.b32.xlu0 %v198, 32
    %v202 = vpop.permute.xlu0 %201
    %v204 = vmul.f32 %v197, %v202
    %206 = vrot.lane.b32.xlu0 %v204, 32
    %v207 = vpop.permute.xlu0 %206
    %v209 = vadd.f32 %v199, %v207
    %v210 = vtanh.pop %v209
    %212 = vrot.lane.b32.xlu0 %v210, 32
    %v213 = vpop.permute.xlu0 %212
    %v215 = vmul.f32 %v197, %v213
    %217 = vrot.lane.b32.xlu0 %v215, 64
    %v218 = vpop.permute.xlu0 %217
    %vm220 = vcmask 123904
    %221 = vst.msk [vmem:[#allocation2] sm:$0x3] %vm220, %v218
    %vm222 = vcmask 255104
    %223 = vst.msk [vmem:[#allocation2 + $0xe] sm:$0x3] %vm222, %v218
    %v225 = vrot.slane %v147, 2
    %v227 = vsel %vm155, %v218, 0
    %229 = vmatpush.msra.mxu0 0.0
    %230 = vmatpush.msra.mxu0 0.0
    %231 = vmatpush.msra.mxu0 0.0
    %232 = vmatpush.msra.mxu0 0.0
    %233 = vmatpush.msra.mxu0 0.0
    %234 = vmatpush.msra.mxu0 0.0
    %235 = vmatpush.msra.mxu0 0.0
    %236 = vmatpush.msra.mxu0 0.0
    %237 = vmatpush.msra.mxu0 0.0
    %238 = vmatpush.msra.mxu0 0.0
    %239 = vmatpush.msra.mxu0 0.0
    %240 = vmatpush.msra.mxu0 0.0
    %241 = vmatpush.msra.mxu0 %v64
    %242 = vmatpush.msra.mxu0 %v63
    %243 = vmatpush.msra.mxu0 %v62
    %244 = vmatpush.msra.mxu0 %v61
    %245 = vmatmul.f32.gmra.mxu0 %v227
    %v246 = vpop.f32.mrf.mxu0
    %v247 = vadd.f32 %v225, %v246
    %248 = vdwg.mxu0
    %v249 = vxor.u32 %v247, 2147483648
    %v250 = vmul.f32 %v249, 1.442695
    %v251 = vpow.pop %v250
    %v252 = vadd.f32 %v251, 1.0
    %v253 = vrcp.pop %v252
    %v254 = vmul.f32 %v252, %v253
    %v255 = vsub.f32 1.0, %v254
    %v256 = vmul.f32 %v253, %v255
    %v257 = vadd.f32 %v253, %v256
    %vm258 = vweird.f32 %v252
    %vm259 = vweird.f32 %v253
    %vm260 = vmor %vm258, %vm259
    %v261 = vsel %vm260, %v253, %v257
    %v262 = vand.u32 2147483647, %v252
    %vm263 = vcmp.eq.f32.partialorder %v262, 8.507059e+37
    %v264 = vand.u32 %v252, 2147483648
    %v265 = vor.u32 1.1754944e-38, %v264
    %v266 = vsel %vm263, %v265, %v261
    %v267 = vmul.f32 1.0, %v266
    %v268 = vtanh.pop %v247
    %v269 = vmul.f32 %v267, %v209
    %271 = vrot.lane.b32.xlu0 %v268, 32
    %v272 = vpop.permute.xlu0 %271
    %v274 = vmul.f32 %v267, %v272
    %276 = vrot.lane.b32.xlu0 %v274, 32
    %v277 = vpop.permute.xlu0 %276
    %v279 = vadd.f32 %v269, %v277
    %v280 = vtanh.pop %v279
    %282 = vrot.lane.b32.xlu0 %v280, 32
    %v283 = vpop.permute.xlu0 %282
    %v285 = vmul.f32 %v267, %v283
    %287 = vrot.lane.b32.xlu0 %v285, 64
    %v288 = vpop.permute.xlu0 %287
    %290 = vst.msk [vmem:[#allocation2 + $0x2] sm:$0x3] %vm220, %v288
    %291 = vst.msk [vmem:[#allocation2 + $0xc] sm:$0x3] %vm222, %v288
    %v293 = vrot.slane %v144, 4
    %v295 = vsel %vm155, %v288, 0
    %297 = vmatpush.msra.mxu0 0.0
    %298 = vmatpush.msra.mxu0 0.0
    %299 = vmatpush.msra.mxu0 0.0
    %300 = vmatpush.msra.mxu0 0.0
    %301 = vmatpush.msra.mxu0 0.0
    %302 = vmatpush.msra.mxu0 0.0
    %303 = vmatpush.msra.mxu0 0.0
    %304 = vmatpush.msra.mxu0 0.0
    %305 = vmatpush.msra.mxu0 0.0
    %306 = vmatpush.msra.mxu0 0.0
    %307 = vmatpush.msra.mxu0 0.0
    %308 = vmatpush.msra.mxu0 0.0
    %309 = vmatpush.msra.mxu0 %v64
    %310 = vmatpush.msra.mxu0 %v63
    %311 = vmatpush.msra.mxu0 %v62
    %312 = vmatpush.msra.mxu0 %v61
    %313 = vmatmul.f32.gmra.mxu0 %v295
    %v314 = vpop.f32.mrf.mxu0
    %v315 = vadd.f32 %v293, %v314
    %316 = vdwg.mxu0
    %v317 = vxor.u32 %v315, 2147483648
    %v318 = vmul.f32 %v317, 1.442695
    %v319 = vpow.pop %v318
    %v320 = vadd.f32 %v319, 1.0
    %v321 = vrcp.pop %v320
    %v322 = vmul.f32 %v320, %v321
    %v323 = vsub.f32 1.0, %v322
    %v324 = vmul.f32 %v321, %v323
    %v325 = vadd.f32 %v321, %v324
    %vm326 = vweird.f32 %v320
    %vm327 = vweird.f32 %v321
    %vm328 = vmor %vm326, %vm327
    %v329 = vsel %vm328, %v321, %v325
    %v330 = vand.u32 2147483647, %v320
    %vm331 = vcmp.eq.f32.partialorder %v330, 8.507059e+37
    %v332 = vand.u32 %v320, 2147483648
    %v333 = vor.u32 1.1754944e-38, %v332
    %v334 = vsel %vm331, %v333, %v329
    %v335 = vmul.f32 1.0, %v334
    %v336 = vtanh.pop %v315
    %v337 = vmul.f32 %v335, %v279
    %339 = vrot.lane.b32.xlu0 %v336, 32
    %v340 = vpop.permute.xlu0 %339
    %v342 = vmul.f32 %v335, %v340
    %344 = vrot.lane.b32.xlu0 %v342, 32
    %v345 = vpop.permute.xlu0 %344
    %v347 = vadd.f32 %v337, %v345
    %v348 = vtanh.pop %v347
    %350 = vrot.lane.b32.xlu0 %v348, 32
    %v351 = vpop.permute.xlu0 %350
    %v353 = vmul.f32 %v335, %v351
    %355 = vrot.lane.b32.xlu0 %v353, 64
    %v356 = vpop.permute.xlu0 %355
    %358 = vst.msk [vmem:[#allocation2 + $0x4] sm:$0x3] %vm220, %v356
    %359 = vst.msk [vmem:[#allocation2 + $0xa] sm:$0x3] %vm222, %v356
    %v360 = vrot.slane %v147, 6
    %v362 = vsel %vm155, %v356, 0
    %364 = vmatpush.msra.mxu0 0.0
    %365 = vmatpush.msra.mxu0 0.0
    %366 = vmatpush.msra.mxu0 0.0
    %367 = vmatpush.msra.mxu0 0.0
    %368 = vmatpush.msra.mxu0 0.0
    %369 = vmatpush.msra.mxu0 0.0
    %370 = vmatpush.msra.mxu0 0.0
    %371 = vmatpush.msra.mxu0 0.0
    %372 = vmatpush.msra.mxu0 0.0
    %373 = vmatpush.msra.mxu0 0.0
    %374 = vmatpush.msra.mxu0 0.0
    %375 = vmatpush.msra.mxu0 0.0
    %376 = vmatpush.msra.mxu0 %v64
    %377 = vmatpush.msra.mxu0 %v63
    %378 = vmatpush.msra.mxu0 %v62
    %379 = vmatpush.msra.mxu0 %v61
    %380 = vmatmul.f32.gmra.mxu0 %v362
    %v381 = vpop.f32.mrf.mxu0
    %v382 = vadd.f32 %v360, %v381
    %383 = vdwg.mxu0
    %v384 = vxor.u32 %v382, 2147483648
    %v385 = vmul.f32 %v384, 1.442695
    %v386 = vpow.pop %v385
    %v387 = vadd.f32 %v386, 1.0
    %v388 = vrcp.pop %v387
    %v389 = vmul.f32 %v387, %v388
    %v390 = vsub.f32 1.0, %v389
    %v391 = vmul.f32 %v388, %v390
    %v392 = vadd.f32 %v388, %v391
    %vm393 = vweird.f32 %v387
    %vm394 = vweird.f32 %v388
    %vm395 = vmor %vm393, %vm394
    %v396 = vsel %vm395, %v388, %v392
    %v397 = vand.u32 2147483647, %v387
    %vm398 = vcmp.eq.f32.partialorder %v397, 8.507059e+37
    %v399 = vand.u32 %v387, 2147483648
    %v400 = vor.u32 1.1754944e-38, %v399
    %v401 = vsel %vm398, %v400, %v396
    %v402 = vmul.f32 1.0, %v401
    %v403 = vtanh.pop %v382
    %v404 = vmul.f32 %v402, %v347
    %406 = vrot.lane.b32.xlu0 %v403, 32
    %v407 = vpop.permute.xlu0 %406
    %v409 = vmul.f32 %v402, %v407
    %411 = vrot.lane.b32.xlu0 %v409, 32
    %v412 = vpop.permute.xlu0 %411
    %v414 = vadd.f32 %v404, %v412
    %v415 = vtanh.pop %v414
    %417 = vrot.lane.b32.xlu0 %v415, 32
    %v418 = vpop.permute.xlu0 %417
    %v420 = vmul.f32 %v402, %v418
    %422 = vrot.lane.b32.xlu0 %v420, 64
    %v423 = vpop.permute.xlu0 %422
    %425 = vst.msk [vmem:[#allocation2 + $0x6] sm:$0x3] %vm220, %v423
    %426 = vst.msk [vmem:[#allocation2 + $0x8] sm:$0x3] %vm222, %v423
    %v427 = vsel %vm155, %v423, 0
    %429 = vmatpush.msra.mxu0 0.0
    %430 = vmatpush.msra.mxu0 0.0
    %431 = vmatpush.msra.mxu0 0.0
    %432 = vmatpush.msra.mxu0 0.0
    %433 = vmatpush.msra.mxu0 0.0
    %434 = vmatpush.msra.mxu0 0.0
    %435 = vmatpush.msra.mxu0 0.0
    %436 = vmatpush.msra.mxu0 0.0
    %437 = vmatpush.msra.mxu0 0.0
    %438 = vmatpush.msra.mxu0 0.0
    %439 = vmatpush.msra.mxu0 0.0
    %440 = vmatpush.msra.mxu0 0.0
    %441 = vmatpush.msra.mxu0 %v64
    %442 = vmatpush.msra.mxu0 %v63
    %443 = vmatpush.msra.mxu0 %v62
    %444 = vmatpush.msra.mxu0 %v61
    %445 = vmatmul.f32.gmra.mxu0 %v427
    %v446 = vpop.f32.mrf.mxu0
    %v447 = vadd.f32 %v151, %v446
    %448 = vdwg.mxu0
    %v449 = vxor.u32 %v447, 2147483648
    %v450 = vmul.f32 %v449, 1.442695
    %v451 = vpow.pop %v450
    %v452 = vadd.f32 %v451, 1.0
    %v453 = vrcp.pop %v452
    %v454 = vmul.f32 %v452, %v453
    %v455 = vsub.f32 1.0, %v454
    %v456 = vmul.f32 %v453, %v455
    %v457 = vadd.f32 %v453, %v456
    %vm458 = vweird.f32 %v452
    %vm459 = vweird.f32 %v453
    %vm460 = vmor %vm458, %vm459
    %v461 = vsel %vm460, %v453, %v457
    %v462 = vand.u32 2147483647, %v452
    %vm463 = vcmp.eq.f32.partialorder %v462, 8.507059e+37
    %v464 = vand.u32 %v452, 2147483648
    %v465 = vor.u32 1.1754944e-38, %v464
    %v466 = vsel %vm463, %v465, %v461
    %v467 = vmul.f32 1.0, %v466
    %v468 = vtanh.pop %v447
    %v469 = vmul.f32 %v467, %v414
    %471 = vrot.lane.b32.xlu0 %v468, 32
    %v472 = vpop.permute.xlu0 %471
    %v474 = vmul.f32 %v467, %v472
    %476 = vrot.lane.b32.xlu0 %v474, 32
    %v477 = vpop.permute.xlu0 %476
    %v479 = vadd.f32 %v469, %v477
    %v480 = vtanh.pop %v479
    %482 = vrot.lane.b32.xlu0 %v480, 32
    %v483 = vpop.permute.xlu0 %482
    %v485 = vmul.f32 %v467, %v483
    %487 = vrot.lane.b32.xlu0 %v485, 64
    %v488 = vpop.permute.xlu0 %487
    %490 = vst.msk [vmem:[#allocation2 + $0x8] sm:$0x3] %vm220, %v488
    %491 = vst.msk [vmem:[#allocation2 + $0x6] sm:$0x3] %vm222, %v488
    %v493 = vrot.slane %v154, 2
    %v495 = vsel %vm155, %v488, 0
    %497 = vmatpush.msra.mxu0 0.0
    %498 = vmatpush.msra.mxu0 0.0
    %499 = vmatpush.msra.mxu0 0.0
    %500 = vmatpush.msra.mxu0 0.0
    %501 = vmatpush.msra.mxu0 0.0
    %502 = vmatpush.msra.mxu0 0.0
    %503 = vmatpush.msra.mxu0 0.0
    %504 = vmatpush.msra.mxu0 0.0
    %505 = vmatpush.msra.mxu0 0.0
    %506 = vmatpush.msra.mxu0 0.0
    %507 = vmatpush.msra.mxu0 0.0
    %508 = vmatpush.msra.mxu0 0.0
    %509 = vmatpush.msra.mxu0 %v64
    %510 = vmatpush.msra.mxu0 %v63
    %511 = vmatpush.msra.mxu0 %v62
    %512 = vmatpush.msra.mxu0 %v61
    %513 = vmatmul.f32.gmra.mxu0 %v495
    %v514 = vpop.f32.mrf.mxu0
    %v515 = vadd.f32 %v493, %v514
    %516 = vdwg.mxu0
    %v517 = vxor.u32 %v515, 2147483648
    %v518 = vmul.f32 %v517, 1.442695
    %v519 = vpow.pop %v518
    %v520 = vadd.f32 %v519, 1.0
    %v521 = vrcp.pop %v520
    %v522 = vmul.f32 %v520, %v521
    %v523 = vsub.f32 1.0, %v522
    %v524 = vmul.f32 %v521, %v523
    %v525 = vadd.f32 %v521, %v524
    %vm526 = vweird.f32 %v520
    %vm527 = vweird.f32 %v521
    %vm528 = vmor %vm526, %vm527
    %v529 = vsel %vm528, %v521, %v525
    %v530 = vand.u32 2147483647, %v520
    %vm531 = vcmp.eq.f32.partialorder %v530, 8.507059e+37
    %v532 = vand.u32 %v520, 2147483648
    %v533 = vor.u32 1.1754944e-38, %v532
    %v534 = vsel %vm531, %v533, %v529
    %v535 = vmul.f32 1.0, %v534
    %v536 = vtanh.pop %v515
    %v537 = vmul.f32 %v535, %v479
    %539 = vrot.lane.b32.xlu0 %v536, 32
    %v540 = vpop.permute.xlu0 %539
    %v542 = vmul.f32 %v535, %v540
    %544 = vrot.lane.b32.xlu0 %v542, 32
    %v545 = vpop.permute.xlu0 %544
    %v547 = vadd.f32 %v537, %v545
    %v548 = vtanh.pop %v547
    %550 = vrot.lane.b32.xlu0 %v548, 32
    %v551 = vpop.permute.xlu0 %550
    %v553 = vmul.f32 %v535, %v551
    %555 = vrot.lane.b32.xlu0 %v553, 64
    %v556 = vpop.permute.xlu0 %555
    %558 = vst.msk [vmem:[#allocation2 + $0xa] sm:$0x3] %vm220, %v556
    %559 = vst.msk [vmem:[#allocation2 + $0x4] sm:$0x3] %vm222, %v556
    %v561 = vrot.slane %v151, 4
    %v563 = vsel %vm155, %v556, 0
    %565 = vmatpush.msra.mxu0 0.0
    %566 = vmatpush.msra.mxu0 0.0
    %567 = vmatpush.msra.mxu0 0.0
    %568 = vmatpush.msra.mxu0 0.0
    %569 = vmatpush.msra.mxu0 0.0
    %570 = vmatpush.msra.mxu0 0.0
    %571 = vmatpush.msra.mxu0 0.0
    %572 = vmatpush.msra.mxu0 0.0
    %573 = vmatpush.msra.mxu0 0.0
    %574 = vmatpush.msra.mxu0 0.0
    %575 = vmatpush.msra.mxu0 0.0
    %576 = vmatpush.msra.mxu0 0.0
    %577 = vmatpush.msra.mxu0 %v64
    %578 = vmatpush.msra.mxu0 %v63
    %579 = vmatpush.msra.mxu0 %v62
    %580 = vmatpush.msra.mxu0 %v61
    %581 = vmatmul.f32.gmra.mxu0 %v563
    %v582 = vpop.f32.mrf.mxu0
    %v583 = vadd.f32 %v561, %v582
    %584 = vdwg.mxu0
    %v585 = vxor.u32 %v583, 2147483648
    %v586 = vmul.f32 %v585, 1.442695
    %v587 = vpow.pop %v586
    %v588 = vadd.f32 %v587, 1.0
    %v589 = vrcp.pop %v588
    %v590 = vmul.f32 %v588, %v589
    %v591 = vsub.f32 1.0, %v590
    %v592 = vmul.f32 %v589, %v591
    %v593 = vadd.f32 %v589, %v592
    %vm594 = vweird.f32 %v588
    %vm595 = vweird.f32 %v589
    %vm596 = vmor %vm594, %vm595
    %v597 = vsel %vm596, %v589, %v593
    %v598 = vand.u32 2147483647, %v588
    %vm599 = vcmp.eq.f32.partialorder %v598, 8.507059e+37
    %v600 = vand.u32 %v588, 2147483648
    %v601 = vor.u32 1.1754944e-38, %v600
    %v602 = vsel %vm599, %v601, %v597
    %v603 = vmul.f32 1.0, %v602
    %v604 = vtanh.pop %v583
    %v605 = vmul.f32 %v603, %v547
    %607 = vrot.lane.b32.xlu0 %v604, 32
    %v608 = vpop.permute.xlu0 %607
    %v610 = vmul.f32 %v603, %v608
    %612 = vrot.lane.b32.xlu0 %v610, 32
    %v613 = vpop.permute.xlu0 %612
    %v615 = vadd.f32 %v605, %v613
    %v616 = vtanh.pop %v615
    %618 = vrot.lane.b32.xlu0 %v616, 32
    %v619 = vpop.permute.xlu0 %618
    %v621 = vmul.f32 %v603, %v619
    %623 = vrot.lane.b32.xlu0 %v621, 64
    %v624 = vpop.permute.xlu0 %623
    %626 = vst.msk [vmem:[#allocation2 + $0xc] sm:$0x3] %vm220, %v624
    %627 = vst.msk [vmem:[#allocation2 + $0x2] sm:$0x3] %vm222, %v624
    %v628 = vrot.slane %v154, 6
    %v630 = vsel %vm155, %v624, 0
    %632 = vmatpush.msra.mxu0 0.0
    %633 = vmatpush.msra.mxu0 0.0
    %634 = vmatpush.msra.mxu0 0.0
    %635 = vmatpush.msra.mxu0 0.0
    %636 = vmatpush.msra.mxu0 0.0
    %637 = vmatpush.msra.mxu0 0.0
    %638 = vmatpush.msra.mxu0 0.0
    %639 = vmatpush.msra.mxu0 0.0
    %640 = vmatpush.msra.mxu0 0.0
    %641 = vmatpush.msra.mxu0 0.0
    %642 = vmatpush.msra.mxu0 0.0
    %643 = vmatpush.msra.mxu0 0.0
    %644 = vmatpush.msra.mxu0 %v64
    %645 = vmatpush.msra.mxu0 %v63
    %646 = vmatpush.msra.mxu0 %v62
    %647 = vmatpush.msra.mxu0 %v61
    %648 = vmatmul.f32.gmra.mxu0 %v630
    %v649 = vpop.f32.mrf.mxu0
    %v650 = vadd.f32 %v628, %v649
    %651 = vdwg.mxu0
    %v652 = vxor.u32 %v650, 2147483648
    %v653 = vmul.f32 %v652, 1.442695
    %v654 = vpow.pop %v653
    %v655 = vadd.f32 %v654, 1.0
    %v656 = vrcp.pop %v655
    %v657 = vmul.f32 %v655, %v656
    %v658 = vsub.f32 1.0, %v657
    %v659 = vmul.f32 %v656, %v658
    %v660 = vadd.f32 %v656, %v659
    %vm661 = vweird.f32 %v655
    %vm662 = vweird.f32 %v656
    %vm663 = vmor %vm661, %vm662
    %v664 = vsel %vm663, %v656, %v660
    %v665 = vand.u32 2147483647, %v655
    %vm666 = vcmp.eq.f32.partialorder %v665, 8.507059e+37
    %v667 = vand.u32 %v655, 2147483648
    %v668 = vor.u32 1.1754944e-38, %v667
    %v669 = vsel %vm666, %v668, %v664
    %v670 = vmul.f32 1.0, %v669
    %v671 = vtanh.pop %v650
    %v672 = vmul.f32 %v670, %v615
    %674 = vrot.lane.b32.xlu0 %v671, 32
    %v675 = vpop.permute.xlu0 %674
    %v677 = vmul.f32 %v670, %v675
    %679 = vrot.lane.b32.xlu0 %v677, 32
    %v680 = vpop.permute.xlu0 %679
    %v682 = vadd.f32 %v672, %v680
    %v683 = vtanh.pop %v682
    %685 = vrot.lane.b32.xlu0 %v683, 32
    %v686 = vpop.permute.xlu0 %685
    %v688 = vmul.f32 %v670, %v686
    %690 = vrot.lane.b32.xlu0 %v688, 64
    %v691 = vpop.permute.xlu0 %690
    %693 = vst.msk [vmem:[#allocation2 + $0xe] sm:$0x3] %vm220, %v691
    %694 = vst.msk [vmem:[#allocation2] sm:$0x3] %vm222, %v691
    %v695 = vld [vmem:[#allocation2] sm:$0xff]
    %v696 = vld [vmem:[#allocation2 + $0x8] sm:$0xff]
    %v697 = vmax.f32 %v695, 0.0
    %v698 = vmax.f32 %v696, 0.0
    %v699 = vperm.slane %v74, 0
    %v701 = vsel %vm155, %v697, 0
    %v704 = vsel %vm155, %v698, 0
    %706 = vmatpush.msra.mxu0 0.0
    %707 = vmatpush.msra.mxu0 0.0
    %708 = vmatpush.msra.mxu0 0.0
    %709 = vmatpush.msra.mxu0 0.0
    %710 = vmatpush.msra.mxu0 0.0
    %711 = vmatpush.msra.mxu0 0.0
    %712 = vmatpush.msra.mxu0 0.0
    %713 = vmatpush.msra.mxu0 0.0
    %714 = vmatpush.msra.mxu0 0.0
    %715 = vmatpush.msra.mxu0 0.0
    %716 = vmatpush.msra.mxu0 0.0
    %717 = vmatpush.msra.mxu0 0.0
    %718 = vmatpush.msra.mxu0 %v68
    %719 = vmatpush.msra.mxu0 %v67
    %720 = vmatpush.msra.mxu0 %v66
    %721 = vmatpush.msra.mxu0 %v65
    %722 = vmatmul.f32.gmra.mxu0 %v701
    %v723 = vpop.f32.mrf.mxu0
    %v724 = vadd.f32 %v699, %v723
    %725 = vmatmul.f32.gmra.mxu0 %v704
    %v726 = vpop.f32.mrf.mxu0
    %v727 = vadd.f32 %v699, %v726
    %728 = vdwg.mxu0
    %v730 = vrot.slane %v727, 6
    %v732 = vsel %vm90, %v724, %v730
    %v733 = vrot.slane %v727, 2
    %v735 = vsel %vm90, %v724, %v733
    %v737 = vrot.slane %v724, 6
    %v739 = vsel %vm90, %v727, %v737
    %v740 = vrot.slane %v724, 2
    %v742 = vsel %vm90, %v727, %v740
    %743 = vmatpush.msra.mxu0 0.0
    %744 = vmatpush.msra.mxu0 0.0
    %745 = vmatpush.msra.mxu0 0.0
    %746 = vmatpush.msra.mxu0 0.0
    %747 = vmatpush.msra.mxu0 0.0
    %748 = vmatpush.msra.mxu0 0.0
    %749 = vmatpush.msra.mxu0 0.0
    %750 = vmatpush.msra.mxu0 0.0
    %751 = vmatpush.msra.mxu0 0.0
    %752 = vmatpush.msra.mxu0 0.0
    %753 = vmatpush.msra.mxu0 0.0
    %754 = vmatpush.msra.mxu0 0.0
    %755 = vmatpush.msra.mxu0 %v72
    %756 = vmatpush.msra.mxu0 %v71
    %757 = vmatpush.msra.mxu0 %v70
    %758 = vmatpush.msra.mxu0 %v69
    %759 = vmatmul.f32.gmra.mxu0 %v157
    %v760 = vpop.f32.mrf.mxu0
    %v761 = vadd.f32 %v732, %v760
    %762 = vdwg.mxu0
    %v763 = vxor.u32 %v761, 2147483648
    %v764 = vmul.f32 %v763, 1.442695
    %v765 = vpow.pop %v764
    %v766 = vadd.f32 %v765, 1.0
    %v767 = vrcp.pop %v766
    %v768 = vmul.f32 %v766, %v767
    %v769 = vsub.f32 1.0, %v768
    %v770 = vmul.f32 %v767, %v769
    %v771 = vadd.f32 %v767, %v770
    %vm772 = vweird.f32 %v766
    %vm773 = vweird.f32 %v767
    %vm774 = vmor %vm772, %vm773
    %v775 = vsel %vm774, %v767, %v771
    %v776 = vand.u32 2147483647, %v766
    %vm777 = vcmp.eq.f32.partialorder %v776, 8.507059e+37
    %v778 = vand.u32 %v766, 2147483648
    %v779 = vor.u32 1.1754944e-38, %v778
    %v780 = vsel %vm777, %v779, %v775
    %v781 = vmul.f32 1.0, %v780
    %v782 = vtanh.pop %v761
    %v783 = vmul.f32 %v781, 0.0
    %785 = vrot.lane.b32.xlu0 %v782, 32
    %v786 = vpop.permute.xlu0 %785
    %v788 = vmul.f32 %v781, %v786
    %790 = vrot.lane.b32.xlu0 %v788, 32
    %v791 = vpop.permute.xlu0 %790
    %v793 = vadd.f32 %v783, %v791
    %v794 = vtanh.pop %v793
    %796 = vrot.lane.b32.xlu0 %v794, 32
    %v797 = vpop.permute.xlu0 %796
    %v799 = vmul.f32 %v781, %v797
    %801 = vrot.lane.b32.xlu0 %v799, 64
    %v802 = vpop.permute.xlu0 %801
    %804 = vst.msk [vmem:[#allocation3] sm:$0x3] %vm220, %v802
    %805 = vst.msk [vmem:[#allocation3 + $0xe] sm:$0x3] %vm222, %v802
    %v807 = vrot.slane %v735, 2
    %v809 = vsel %vm155, %v802, 0
    %811 = vmatpush.msra.mxu0 0.0
    %812 = vmatpush.msra.mxu0 0.0
    %813 = vmatpush.msra.mxu0 0.0
    %814 = vmatpush.msra.mxu0 0.0
    %815 = vmatpush.msra.mxu0 0.0
    %816 = vmatpush.msra.mxu0 0.0
    %817 = vmatpush.msra.mxu0 0.0
    %818 = vmatpush.msra.mxu0 0.0
    %819 = vmatpush.msra.mxu0 0.0
    %820 = vmatpush.msra.mxu0 0.0
    %821 = vmatpush.msra.mxu0 0.0
    %822 = vmatpush.msra.mxu0 0.0
    %823 = vmatpush.msra.mxu0 %v72
    %824 = vmatpush.msra.mxu0 %v71
    %825 = vmatpush.msra.mxu0 %v70
    %826 = vmatpush.msra.mxu0 %v69
    %827 = vmatmul.f32.gmra.mxu0 %v809
    %v828 = vpop.f32.mrf.mxu0
    %v829 = vadd.f32 %v807, %v828
    %830 = vdwg.mxu0
    %v831 = vxor.u32 %v829, 2147483648
    %v832 = vmul.f32 %v831, 1.442695
    %v833 = vpow.pop %v832
    %v834 = vadd.f32 %v833, 1.0
    %v835 = vrcp.pop %v834
    %v836 = vmul.f32 %v834, %v835
    %v837 = vsub.f32 1.0, %v836
    %v838 = vmul.f32 %v835, %v837
    %v839 = vadd.f32 %v835, %v838
    %vm840 = vweird.f32 %v834
    %vm841 = vweird.f32 %v835
    %vm842 = vmor %vm840, %vm841
    %v843 = vsel %vm842, %v835, %v839
    %v844 = vand.u32 2147483647, %v834
    %vm845 = vcmp.eq.f32.partialorder %v844, 8.507059e+37
    %v846 = vand.u32 %v834, 2147483648
    %v847 = vor.u32 1.1754944e-38, %v846
    %v848 = vsel %vm845, %v847, %v843
    %v849 = vmul.f32 1.0, %v848
    %v850 = vtanh.pop %v829
    %v851 = vmul.f32 %v849, %v793
    %853 = vrot.lane.b32.xlu0 %v850, 32
    %v854 = vpop.permute.xlu0 %853
    %v856 = vmul.f32 %v849, %v854
    %858 = vrot.lane.b32.xlu0 %v856, 32
    %v859 = vpop.permute.xlu0 %858
    %v861 = vadd.f32 %v851, %v859
    %v862 = vtanh.pop %v861
    %864 = vrot.lane.b32.xlu0 %v862, 32
    %v865 = vpop.permute.xlu0 %864
    %v867 = vmul.f32 %v849, %v865
    %869 = vrot.lane.b32.xlu0 %v867, 64
    %v870 = vpop.permute.xlu0 %869
    %872 = vst.msk [vmem:[#allocation3 + $0x2] sm:$0x3] %vm220, %v870
    %873 = vst.msk [vmem:[#allocation3 + $0xc] sm:$0x3] %vm222, %v870
    %v875 = vrot.slane %v732, 4
    %v877 = vsel %vm155, %v870, 0
    %879 = vmatpush.msra.mxu0 0.0
    %880 = vmatpush.msra.mxu0 0.0
    %881 = vmatpush.msra.mxu0 0.0
    %882 = vmatpush.msra.mxu0 0.0
    %883 = vmatpush.msra.mxu0 0.0
    %884 = vmatpush.msra.mxu0 0.0
    %885 = vmatpush.msra.mxu0 0.0
    %886 = vmatpush.msra.mxu0 0.0
    %887 = vmatpush.msra.mxu0 0.0
    %888 = vmatpush.msra.mxu0 0.0
    %889 = vmatpush.msra.mxu0 0.0
    %890 = vmatpush.msra.mxu0 0.0
    %891 = vmatpush.msra.mxu0 %v72
    %892 = vmatpush.msra.mxu0 %v71
    %893 = vmatpush.msra.mxu0 %v70
    %894 = vmatpush.msra.mxu0 %v69
    %895 = vmatmul.f32.gmra.mxu0 %v877
    %v896 = vpop.f32.mrf.mxu0
    %v897 = vadd.f32 %v875, %v896
    %898 = vdwg.mxu0
    %v899 = vxor.u32 %v897, 2147483648
    %v900 = vmul.f32 %v899, 1.442695
    %v901 = vpow.pop %v900
    %v902 = vadd.f32 %v901, 1.0
    %v903 = vrcp.pop %v902
    %v904 = vmul.f32 %v902, %v903
    %v905 = vsub.f32 1.0, %v904
    %v906 = vmul.f32 %v903, %v905
    %v907 = vadd.f32 %v903, %v906
    %vm908 = vweird.f32 %v902
    %vm909 = vweird.f32 %v903
    %vm910 = vmor %vm908, %vm909
    %v911 = vsel %vm910, %v903, %v907
    %v912 = vand.u32 2147483647, %v902
    %vm913 = vcmp.eq.f32.partialorder %v912, 8.507059e+37
    %v914 = vand.u32 %v902, 2147483648
    %v915 = vor.u32 1.1754944e-38, %v914
    %v916 = vsel %vm913, %v915, %v911
    %v917 = vmul.f32 1.0, %v916
    %v918 = vtanh.pop %v897
    %v919 = vmul.f32 %v917, %v861
    %921 = vrot.lane.b32.xlu0 %v918, 32
    %v922 = vpop.permute.xlu0 %921
    %v924 = vmul.f32 %v917, %v922
    %926 = vrot.lane.b32.xlu0 %v924, 32
    %v927 = vpop.permute.xlu0 %926
    %v929 = vadd.f32 %v919, %v927
    %v930 = vtanh.pop %v929
    %932 = vrot.lane.b32.xlu0 %v930, 32
    %v933 = vpop.permute.xlu0 %932
    %v935 = vmul.f32 %v917, %v933
    %937 = vrot.lane.b32.xlu0 %v935, 64
    %v938 = vpop.permute.xlu0 %937
    %940 = vst.msk [vmem:[#allocation3 + $0x4] sm:$0x3] %vm220, %v938
    %941 = vst.msk [vmem:[#allocation3 + $0xa] sm:$0x3] %vm222, %v938
    %v942 = vrot.slane %v735, 6
    %v944 = vsel %vm155, %v938, 0
    %946 = vmatpush.msra.mxu0 0.0
    %947 = vmatpush.msra.mxu0 0.0
    %948 = vmatpush.msra.mxu0 0.0
    %949 = vmatpush.msra.mxu0 0.0
    %950 = vmatpush.msra.mxu0 0.0
    %951 = vmatpush.msra.mxu0 0.0
    %952 = vmatpush.msra.mxu0 0.0
    %953 = vmatpush.msra.mxu0 0.0
    %954 = vmatpush.msra.mxu0 0.0
    %955 = vmatpush.msra.mxu0 0.0
    %956 = vmatpush.msra.mxu0 0.0
    %957 = vmatpush.msra.mxu0 0.0
    %958 = vmatpush.msra.mxu0 %v72
    %959 = vmatpush.msra.mxu0 %v71
    %960 = vmatpush.msra.mxu0 %v70
    %961 = vmatpush.msra.mxu0 %v69
    %962 = vmatmul.f32.gmra.mxu0 %v944
    %v963 = vpop.f32.mrf.mxu0
    %v964 = vadd.f32 %v942, %v963
    %965 = vdwg.mxu0
    %v966 = vxor.u32 %v964, 2147483648
    %v967 = vmul.f32 %v966, 1.442695
    %v968 = vpow.pop %v967
    %v969 = vadd.f32 %v968, 1.0
    %v970 = vrcp.pop %v969
    %v971 = vmul.f32 %v969, %v970
    %v972 = vsub.f32 1.0, %v971
    %v973 = vmul.f32 %v970, %v972
    %v974 = vadd.f32 %v970, %v973
    %vm975 = vweird.f32 %v969
    %vm976 = vweird.f32 %v970
    %vm977 = vmor %vm975, %vm976
    %v978 = vsel %vm977, %v970, %v974
    %v979 = vand.u32 2147483647, %v969
    %vm980 = vcmp.eq.f32.partialorder %v979, 8.507059e+37
    %v981 = vand.u32 %v969, 2147483648
    %v982 = vor.u32 1.1754944e-38, %v981
    %v983 = vsel %vm980, %v982, %v978
    %v984 = vmul.f32 1.0, %v983
    %v985 = vtanh.pop %v964
    %v986 = vmul.f32 %v984, %v929
    %988 = vrot.lane.b32.xlu0 %v985, 32
    %v989 = vpop.permute.xlu0 %988
    %v991 = vmul.f32 %v984, %v989
    %993 = vrot.lane.b32.xlu0 %v991, 32
    %v994 = vpop.permute.xlu0 %993
    %v996 = vadd.f32 %v986, %v994
    %v997 = vtanh.pop %v996
    %999 = vrot.lane.b32.xlu0 %v997, 32
    %v1000 = vpop.permute.xlu0 %999
    %v1002 = vmul.f32 %v984, %v1000
    %1004 = vrot.lane.b32.xlu0 %v1002, 64
    %v1005 = vpop.permute.xlu0 %1004
    %1007 = vst.msk [vmem:[#allocation3 + $0x6] sm:$0x3] %vm220, %v1005
    %1008 = vst.msk [vmem:[#allocation3 + $0x8] sm:$0x3] %vm222, %v1005
    %v1009 = vsel %vm155, %v1005, 0
    %1011 = vmatpush.msra.mxu0 0.0
    %1012 = vmatpush.msra.mxu0 0.0
    %1013 = vmatpush.msra.mxu0 0.0
    %1014 = vmatpush.msra.mxu0 0.0
    %1015 = vmatpush.msra.mxu0 0.0
    %1016 = vmatpush.msra.mxu0 0.0
    %1017 = vmatpush.msra.mxu0 0.0
    %1018 = vmatpush.msra.mxu0 0.0
    %1019 = vmatpush.msra.mxu0 0.0
    %1020 = vmatpush.msra.mxu0 0.0
    %1021 = vmatpush.msra.mxu0 0.0
    %1022 = vmatpush.msra.mxu0 0.0
    %1023 = vmatpush.msra.mxu0 %v72
    %1024 = vmatpush.msra.mxu0 %v71
    %1025 = vmatpush.msra.mxu0 %v70
    %1026 = vmatpush.msra.mxu0 %v69
    %1027 = vmatmul.f32.gmra.mxu0 %v1009
    %v1028 = vpop.f32.mrf.mxu0
    %v1029 = vadd.f32 %v739, %v1028
    %1030 = vdwg.mxu0
    %v1031 = vxor.u32 %v1029, 2147483648
    %v1032 = vmul.f32 %v1031, 1.442695
    %v1033 = vpow.pop %v1032
    %v1034 = vadd.f32 %v1033, 1.0
    %v1035 = vrcp.pop %v1034
    %v1036 = vmul.f32 %v1034, %v1035
    %v1037 = vsub.f32 1.0, %v1036
    %v1038 = vmul.f32 %v1035, %v1037
    %v1039 = vadd.f32 %v1035, %v1038
    %vm1040 = vweird.f32 %v1034
    %vm1041 = vweird.f32 %v1035
    %vm1042 = vmor %vm1040, %vm1041
    %v1043 = vsel %vm1042, %v1035, %v1039
    %v1044 = vand.u32 2147483647, %v1034
    %vm1045 = vcmp.eq.f32.partialorder %v1044, 8.507059e+37
    %v1046 = vand.u32 %v1034, 2147483648
    %v1047 = vor.u32 1.1754944e-38, %v1046
    %v1048 = vsel %vm1045, %v1047, %v1043
    %v1049 = vmul.f32 1.0, %v1048
    %v1050 = vtanh.pop %v1029
    %v1051 = vmul.f32 %v1049, %v996
    %1053 = vrot.lane.b32.xlu0 %v1050, 32
    %v1054 = vpop.permute.xlu0 %1053
    %v1056 = vmul.f32 %v1049, %v1054
    %1058 = vrot.lane.b32.xlu0 %v1056, 32
    %v1059 = vpop.permute.xlu0 %1058
    %v1061 = vadd.f32 %v1051, %v1059
    %v1062 = vtanh.pop %v1061
    %1064 = vrot.lane.b32.xlu0 %v1062, 32
    %v1065 = vpop.permute.xlu0 %1064
    %v1067 = vmul.f32 %v1049, %v1065
    %1069 = vrot.lane.b32.xlu0 %v1067, 64
    %v1070 = vpop.permute.xlu0 %1069
    %1072 = vst.msk [vmem:[#allocation3 + $0x8] sm:$0x3] %vm220, %v1070
    %1073 = vst.msk [vmem:[#allocation3 + $0x6] sm:$0x3] %vm222, %v1070
    %v1075 = vrot.slane %v742, 2
    %v1077 = vsel %vm155, %v1070, 0
    %1079 = vmatpush.msra.mxu0 0.0
    %1080 = vmatpush.msra.mxu0 0.0
    %1081 = vmatpush.msra.mxu0 0.0
    %1082 = vmatpush.msra.mxu0 0.0
    %1083 = vmatpush.msra.mxu0 0.0
    %1084 = vmatpush.msra.mxu0 0.0
    %1085 = vmatpush.msra.mxu0 0.0
    %1086 = vmatpush.msra.mxu0 0.0
    %1087 = vmatpush.msra.mxu0 0.0
    %1088 = vmatpush.msra.mxu0 0.0
    %1089 = vmatpush.msra.mxu0 0.0
    %1090 = vmatpush.msra.mxu0 0.0
    %1091 = vmatpush.msra.mxu0 %v72
    %1092 = vmatpush.msra.mxu0 %v71
    %1093 = vmatpush.msra.mxu0 %v70
    %1094 = vmatpush.msra.mxu0 %v69
    %1095 = vmatmul.f32.gmra.mxu0 %v1077
    %v1096 = vpop.f32.mrf.mxu0
    %v1097 = vadd.f32 %v1075, %v1096
    %1098 = vdwg.mxu0
    %v1099 = vxor.u32 %v1097, 2147483648
    %v1100 = vmul.f32 %v1099, 1.442695
    %v1101 = vpow.pop %v1100
    %v1102 = vadd.f32 %v1101, 1.0
    %v1103 = vrcp.pop %v1102
    %v1104 = vmul.f32 %v1102, %v1103
    %v1105 = vsub.f32 1.0, %v1104
    %v1106 = vmul.f32 %v1103, %v1105
    %v1107 = vadd.f32 %v1103, %v1106
    %vm1108 = vweird.f32 %v1102
    %vm1109 = vweird.f32 %v1103
    %vm1110 = vmor %vm1108, %vm1109
    %v1111 = vsel %vm1110, %v1103, %v1107
    %v1112 = vand.u32 2147483647, %v1102
    %vm1113 = vcmp.eq.f32.partialorder %v1112, 8.507059e+37
    %v1114 = vand.u32 %v1102, 2147483648
    %v1115 = vor.u32 1.1754944e-38, %v1114
    %v1116 = vsel %vm1113, %v1115, %v1111
    %v1117 = vmul.f32 1.0, %v1116
    %v1118 = vtanh.pop %v1097
    %v1119 = vmul.f32 %v1117, %v1061
    %1121 = vrot.lane.b32.xlu0 %v1118, 32
    %v1122 = vpop.permute.xlu0 %1121
    %v1124 = vmul.f32 %v1117, %v1122
    %1126 = vrot.lane.b32.xlu0 %v1124, 32
    %v1127 = vpop.permute.xlu0 %1126
    %v1129 = vadd.f32 %v1119, %v1127
    %v1130 = vtanh.pop %v1129
    %1132 = vrot.lane.b32.xlu0 %v1130, 32
    %v1133 = vpop.permute.xlu0 %1132
    %v1135 = vmul.f32 %v1117, %v1133
    %1137 = vrot.lane.b32.xlu0 %v1135, 64
    %v1138 = vpop.permute.xlu0 %1137
    %1140 = vst.msk [vmem:[#allocation3 + $0xa] sm:$0x3] %vm220, %v1138
    %1141 = vst.msk [vmem:[#allocation3 + $0x4] sm:$0x3] %vm222, %v1138
    %v1143 = vrot.slane %v739, 4
    %v1145 = vsel %vm155, %v1138, 0
    %1147 = vmatpush.msra.mxu0 0.0
    %1148 = vmatpush.msra.mxu0 0.0
    %1149 = vmatpush.msra.mxu0 0.0
    %1150 = vmatpush.msra.mxu0 0.0
    %1151 = vmatpush.msra.mxu0 0.0
    %1152 = vmatpush.msra.mxu0 0.0
    %1153 = vmatpush.msra.mxu0 0.0
    %1154 = vmatpush.msra.mxu0 0.0
    %1155 = vmatpush.msra.mxu0 0.0
    %1156 = vmatpush.msra.mxu0 0.0
    %1157 = vmatpush.msra.mxu0 0.0
    %1158 = vmatpush.msra.mxu0 0.0
    %1159 = vmatpush.msra.mxu0 %v72
    %1160 = vmatpush.msra.mxu0 %v71
    %1161 = vmatpush.msra.mxu0 %v70
    %1162 = vmatpush.msra.mxu0 %v69
    %1163 = vmatmul.f32.gmra.mxu0 %v1145
    %v1164 = vpop.f32.mrf.mxu0
    %v1165 = vadd.f32 %v1143, %v1164
    %1166 = vdwg.mxu0
    %v1167 = vxor.u32 %v1165, 2147483648
    %v1168 = vmul.f32 %v1167, 1.442695
    %v1169 = vpow.pop %v1168
    %v1170 = vadd.f32 %v1169, 1.0
    %v1171 = vrcp.pop %v1170
    %v1172 = vmul.f32 %v1170, %v1171
    %v1173 = vsub.f32 1.0, %v1172
    %v1174 = vmul.f32 %v1171, %v1173
    %v1175 = vadd.f32 %v1171, %v1174
    %vm1176 = vweird.f32 %v1170
    %vm1177 = vweird.f32 %v1171
    %vm1178 = vmor %vm1176, %vm1177
    %v1179 = vsel %vm1178, %v1171, %v1175
    %v1180 = vand.u32 2147483647, %v1170
    %vm1181 = vcmp.eq.f32.partialorder %v1180, 8.507059e+37
    %v1182 = vand.u32 %v1170, 2147483648
    %v1183 = vor.u32 1.1754944e-38, %v1182
    %v1184 = vsel %vm1181, %v1183, %v1179
    %v1185 = vmul.f32 1.0, %v1184
    %v1186 = vtanh.pop %v1165
    %v1187 = vmul.f32 %v1185, %v1129
    %1189 = vrot.lane.b32.xlu0 %v1186, 32
    %v1190 = vpop.permute.xlu0 %1189
    %v1192 = vmul.f32 %v1185, %v1190
    %1194 = vrot.lane.b32.xlu0 %v1192, 32
    %v1195 = vpop.permute.xlu0 %1194
    %v1197 = vadd.f32 %v1187, %v1195
    %v1198 = vtanh.pop %v1197
    %1200 = vrot.lane.b32.xlu0 %v1198, 32
    %v1201 = vpop.permute.xlu0 %1200
    %v1203 = vmul.f32 %v1185, %v1201
    %1205 = vrot.lane.b32.xlu0 %v1203, 64
    %v1206 = vpop.permute.xlu0 %1205
    %1208 = vst.msk [vmem:[#allocation3 + $0xc] sm:$0x3] %vm220, %v1206
    %1209 = vst.msk [vmem:[#allocation3 + $0x2] sm:$0x3] %vm222, %v1206
    %v1210 = vrot.slane %v742, 6
    %v1212 = vsel %vm155, %v1206, 0
    %1214 = vmatpush.msra.mxu0 0.0
    %1215 = vmatpush.msra.mxu0 0.0
    %1216 = vmatpush.msra.mxu0 0.0
    %1217 = vmatpush.msra.mxu0 0.0
    %1218 = vmatpush.msra.mxu0 0.0
    %1219 = vmatpush.msra.mxu0 0.0
    %1220 = vmatpush.msra.mxu0 0.0
    %1221 = vmatpush.msra.mxu0 0.0
    %1222 = vmatpush.msra.mxu0 0.0
    %1223 = vmatpush.msra.mxu0 0.0
    %1224 = vmatpush.msra.mxu0 0.0
    %1225 = vmatpush.msra.mxu0 0.0
    %1226 = vmatpush.msra.mxu0 %v72
    %1227 = vmatpush.msra.mxu0 %v71
    %1228 = vmatpush.msra.mxu0 %v70
    %1229 = vmatpush.msra.mxu0 %v69
    %1230 = vmatmul.f32.gmra.mxu0 %v1212
    %v1231 = vpop.f32.mrf.mxu0
    %v1232 = vadd.f32 %v1210, %v1231
    %1233 = vdwg.mxu0
    %v1234 = vxor.u32 %v1232, 2147483648
    %v1235 = vmul.f32 %v1234, 1.442695
    %v1236 = vpow.pop %v1235
    %v1237 = vadd.f32 %v1236, 1.0
    %v1238 = vrcp.pop %v1237
    %v1239 = vmul.f32 %v1237, %v1238
    %v1240 = vsub.f32 1.0, %v1239
    %v1241 = vmul.f32 %v1238, %v1240
    %v1242 = vadd.f32 %v1238, %v1241
    %vm1243 = vweird.f32 %v1237
    %vm1244 = vweird.f32 %v1238
    %vm1245 = vmor %vm1243, %vm1244
    %v1246 = vsel %vm1245, %v1238, %v1242
    %v1247 = vand.u32 2147483647, %v1237
    %vm1248 = vcmp.eq.f32.partialorder %v1247, 8.507059e+37
    %v1249 = vand.u32 %v1237, 2147483648
    %v1250 = vor.u32 1.1754944e-38, %v1249
    %v1251 = vsel %vm1248, %v1250, %v1246
    %v1252 = vmul.f32 1.0, %v1251
    %v1253 = vtanh.pop %v1232
    %v1254 = vmul.f32 %v1252, %v1197
    %1256 = vrot.lane.b32.xlu0 %v1253, 32
    %v1257 = vpop.permute.xlu0 %1256
    %v1259 = vmul.f32 %v1252, %v1257
    %1261 = vrot.lane.b32.xlu0 %v1259, 32
    %v1262 = vpop.permute.xlu0 %1261
    %v1264 = vadd.f32 %v1254, %v1262
    %v1265 = vtanh.pop %v1264
    %1267 = vrot.lane.b32.xlu0 %v1265, 32
    %v1268 = vpop.permute.xlu0 %1267
    %v1270 = vmul.f32 %v1252, %v1268
    %1272 = vrot.lane.b32.xlu0 %v1270, 64
    %v1273 = vpop.permute.xlu0 %1272
    %1275 = vst.msk [vmem:[#allocation3 + $0xe] sm:$0x3] %vm220, %v1273
    %1276 = vst.msk [vmem:[#allocation3] sm:$0x3] %vm222, %v1273
    %v1277 = vld [vmem:[#allocation3] sm:$0xff]
    %v1278 = vld [vmem:[#allocation3 + $0x8] sm:$0xff]
    %v1279 = vmax.f32 %v1277, 0.0
    %v1280 = vmax.f32 %v1278, 0.0
    %v1281 = vperm.slane %v75, 0
    %v1282 = vmul.f32 %v1279, %v1281
    %v1283 = vmul.f32 %v1280, %v1281
    %v1284 = vsel %vm155, %v1282, 0.0
    %1285 = vadd.xlane.f32.xlu0 %v1284
    %v1286 = vpop.xlane.xlu0 %1285
    %v1287 = vsel %vm155, %v1283, 0.0
    %1288 = vadd.xlane.f32.xlu0 %v1287
    %v1289 = vpop.xlane.xlu0 %1288
    %v1290 = vadd.f32 %v1286, %v1281
    %v1291 = vadd.f32 %v1289, %v1281
    %v1292 = vxor.u32 %v1290, 2147483648
    %v1293 = vxor.u32 %v1291, 2147483648
    %v1294 = vmul.f32 %v1292, 1.442695
    %v1295 = vpow.pop %v1294
    %v1296 = vmul.f32 %v1293, 1.442695
    %v1297 = vpow.pop %v1296
    %v1298 = vadd.f32 %v1295, 1.0
    %v1299 = vadd.f32 %v1297, 1.0
    %v1300 = vrcp.pop %v1298
    %v1301 = vmul.f32 %v1298, %v1300
    %v1302 = vsub.f32 1.0, %v1301
    %v1303 = vmul.f32 %v1300, %v1302
    %v1304 = vadd.f32 %v1300, %v1303
    %vm1305 = vweird.f32 %v1298
    %vm1306 = vweird.f32 %v1300
    %vm1307 = vmor %vm1305, %vm1306
    %v1308 = vsel %vm1307, %v1300, %v1304
    %v1309 = vand.u32 2147483647, %v1298
    %vm1310 = vcmp.eq.f32.partialorder %v1309, 8.507059e+37
    %v1311 = vand.u32 %v1298, 2147483648
    %v1312 = vor.u32 1.1754944e-38, %v1311
    %v1313 = vsel %vm1310, %v1312, %v1308
    %v1314 = vmul.f32 1.0, %v1313
    %v1315 = vrcp.pop %v1299
    %v1316 = vmul.f32 %v1299, %v1315
    %v1317 = vsub.f32 1.0, %v1316
    %v1318 = vmul.f32 %v1315, %v1317
    %v1319 = vadd.f32 %v1315, %v1318
    %vm1320 = vweird.f32 %v1299
    %vm1321 = vweird.f32 %v1315
    %vm1322 = vmor %vm1320, %vm1321
    %v1323 = vsel %vm1322, %v1315, %v1319
    %v1324 = vand.u32 2147483647, %v1299
    %vm1325 = vcmp.eq.f32.partialorder %v1324, 8.507059e+37
    %v1326 = vand.u32 %v1299, 2147483648
    %v1327 = vor.u32 1.1754944e-38, %v1326
    %v1328 = vsel %vm1325, %v1327, %v1323
    %v1329 = vmul.f32 1.0, %v1328
    %1332 = vrot.lane.b32.xlu0 %v1314, 96
    %v1333 = vpop.permute.xlu0 %1332
    %1334 = vrot.lane.b32.xlu0 %v1329, 96
    %v1335 = vpop.permute.xlu0 %1334
    %vm1338 = vcmask 7168
    %1339 = vst.msk [vmem:[%s3] sm:$0xff] %vm1338, %v1333
    %1340 = vst.msk [vmem:[%s3 + $0x8] sm:$0xff] %vm1338, %v1335
    // Predicated region
    $region26: #{tpu_custom_call.1} parent=1 // pred_check
      _
    $region27: #{tpu_custom_call.1} parent=1 // pred_check_branch
      %1342 = sbr.rel (0) target = $region29
    $region28: #{tpu_custom_call.1} parent=1 // pred_region
      _
    $region29: #{tpu_custom_call.1} parent=1 // pred_fallthru
      _
    // Predicated region
    $region30: #{tpu_custom_call.1} parent=1 // pred_check
      _
    $region31: #{tpu_custom_call.1} parent=1 // pred_check_branch
      %1344 = sbr.rel (0) target = $region33
    $region32: #{tpu_custom_call.1} parent=1 // pred_region
      _
    $region33: #{tpu_custom_call.1} parent=1 // pred_fallthru
      _
    %1345 = vsyncpa [#allocation5], 1
    %1346 = vsyncpa [#allocation7], 1

</llo_original>
